<compile_context>
chip_gen: v6e
topology: v6e:2x2x1
jax: 0.10.0
libtpu: 0.0.40
codegen_flags: <defaults>
</compile_context>

<pallas_src>
import jax
import jax.numpy as jnp
from jax import lax
from jax.experimental import pallas as pl
from jax.experimental.pallas import tpu as pltpu

NEG_INF = -1e30  # large finite negative: avoids -inf - -inf -> NaN paths


def _head_kernel(x_ref, w_ref, o_ref):
    # x_ref: (1, T, C) bf16
    # w_ref: (C, 4H) bf16 = [scale*Wq | 0 | Wk | Wv]
    # o_ref: (1, T, H)
    T = x_ref.shape[1]
    H = o_ref.shape[2]
    H2 = 2 * H

    x = x_ref[0]                                               # (T, C) bf16

    # One fused projection filling the 256-wide MXU (v6e/v7x).
    proj = jnp.dot(x, w_ref[...],
                   preferred_element_type=jnp.float32)         # (T, 4H) f32
    q_pad = proj[:, :H2].astype(jnp.bfloat16)                  # (T, 2H) = [q*scale | 0]
    kv = proj[:, H2:].astype(jnp.bfloat16)                     # (T, 2H) = [k | v]

    # scores: [q*scale | 0] contracted with [k | v] along H2  ==  scale * q @ k^T
    s = lax.dot_general(q_pad, kv, (((1,), (1,)), ((), ())),
                        preferred_element_type=jnp.float32)    # (T, T) f32

    # causal mask
    row = lax.broadcasted_iota(jnp.int32, (T, T), 0)
    col = lax.broadcasted_iota(jnp.int32, (T, T), 1)
    s = jnp.where(col <= row, s, NEG_INF)

    # single-pass softmax (f32); normalization folded after p @ kv
    m = jnp.max(s, axis=-1, keepdims=True)
    p = jnp.exp(s - m)                                         # unnormalized, in [0, 1]
    l = jnp.sum(p, axis=-1, keepdims=True)                     # (T, 1)

    # out = softmax(s) @ v : do p @ [k|v] lane-dense, take the V half once.
    acc = jnp.dot(p.astype(jnp.bfloat16), kv,
                  preferred_element_type=jnp.float32)          # (T, 2H) f32
    inv_l = pl.reciprocal(l, approx=False)                     # exact; once per tile
    o_ref[0] = (acc[:, H:] * inv_l).astype(o_ref.dtype)
    # TODO(synk): training-mode dropout on the attention weights is not implemented.


def head_forward(x, wq, wk, wv):
    """x: (B, T, C); wq/wk/wv: (C, H) -> (B, T, H). Inference-mode forward.

    Designed for this module's shapes (T <= block_size = 256): the whole
    sequence is processed in one tile per batch element.
    """
    B, T, C = x.shape
    H = wq.shape[1]
    scale = H ** -0.5

    # Fused, lane-aligned projection weight: [scale*Wq | 0 | Wk | Wv] -> (C, 4H).
    w_all = jnp.concatenate(
        [wq * scale, jnp.zeros((C, H), dtype=wq.dtype), wk, wv], axis=1
    ).astype(jnp.bfloat16)

    # bf16 inputs from the wrapper: halves HBM traffic, no in-kernel casts of x.
    x_bf16 = x.astype(jnp.bfloat16)

    return pl.pallas_call(
        _head_kernel,
        out_shape=jax.ShapeDtypeStruct((B, T, H), x.dtype),
        grid_spec=pltpu.PrefetchScalarGridSpec(
            num_scalar_prefetch=0,
            grid=(B,),
            in_specs=[
                pl.BlockSpec((1, T, C), lambda b: (b, 0, 0)),       # x (full seq / batch)
                pl.BlockSpec((C, 4 * H), lambda b: (0, 0)),         # fused weights (resident)
            ],
            out_specs=pl.BlockSpec((1, T, H), lambda b: (b, 0, 0)),
        ),
        compiler_params=pltpu.CompilerParams(
            dimension_semantics=("parallel",),   # v7x: one batch element per TensorCore
        ),
    )(x_bf16, w_all)


def reference_head(x, wq, wk, wv):
    """Pure-JAX f32 reference mirroring the PyTorch forward (inference mode)."""
    k = x @ wk
    q = x @ wq
    v = x @ wv
    scale = k.shape[-1] ** (-0.5)
    wei = jnp.einsum("btd,bsd->bts", q, k) * scale
    T = x.shape[1]
    mask = jnp.tril(jnp.ones((T, T), dtype=bool))
    wei = jnp.where(mask[None, :, :], wei, -jnp.inf)
    wei = jax.nn.softmax(wei, axis=-1)
    return wei @ v


if __name__ == "__main__":
    # Shapes implied by the module: n_embd=384, block_size=256, head_size=64.
    B, T, C, H = 2, 256, 384, 64
    key = jax.random.PRNGKey(0)
    kx, kk, kq, kv = jax.random.split(key, 4)

    x = jax.random.normal(kx, (B, T, C), dtype=jnp.float32)
    # nn.Linear(C, H, bias=False) init ~ U(-1/sqrt(C), 1/sqrt(C)); stored as (C, H).
    bound = 1.0 / (C ** 0.5)
    wk = jax.random.uniform(kk, (C, H), dtype=jnp.float32, minval=-bound, maxval=bound)
    wq = jax.random.uniform(kq, (C, H), dtype=jnp.float32, minval=-bound, maxval=bound)
    wv = jax.random.uniform(kv, (C, H), dtype=jnp.float32, minval=-bound, maxval=bound)

    out = jax.block_until_ready(head_forward(x, wq, wk, wv))
    ref = reference_head(x, wq, wk, wv)

    assert out.shape == (B, T, H)
    # bf16 MXU inputs (f32 accumulation) -> loosened tolerance vs f32 reference.
    assert jnp.allclose(out, ref, atol=3e-2, rtol=3e-2), "mismatch vs reference"

    print("KERNEL_OK")
</pallas_src>

<mosaic_0001>
module attributes {stable_mosaic.version = 11 : i64} {
  func.func @_head_kernel(%arg0: i32, %arg1: memref<1x256x384xbf16, #tpu.memory_space<vmem>>, %arg2: memref<384x256xbf16, #tpu.memory_space<vmem>>, %arg3: memref<1x256x64xf32, #tpu.memory_space<vmem>>) attributes {dimension_semantics = [#tpu.dimension_semantics<parallel>], iteration_bounds = array<i64: 2>, scalar_prefetch = 0 : i64, scratch_operands = 0 : i64, tpu.core_type = #tpu.core_type<tc>, window_params = [{transform_indices = @transform_0, window_bounds = array<i64: 1, 256, 384>}, {pipeline_mode = #tpu.pipeline_mode<synchronous>, transform_indices = @transform_1, window_bounds = array<i64: 384, 256>}, {transform_indices = @transform_2, window_bounds = array<i64: 1, 256, 64>}]} {
    %c0 = arith.constant 0 : index
    %c0_0 = arith.constant 0 : index
    %c0_1 = arith.constant 0 : index
    %0 = vector.load %arg1[%c0, %c0_0, %c0_1] : memref<1x256x384xbf16, #tpu.memory_space<vmem>>, vector<1x256x384xbf16>
    %1 = vector.shape_cast %0 : vector<1x256x384xbf16> to vector<256x384xbf16>
    %c0_2 = arith.constant 0 : index
    %c0_3 = arith.constant 0 : index
    %2 = vector.load %arg2[%c0_2, %c0_3] : memref<384x256xbf16, #tpu.memory_space<vmem>>, vector<384x256xbf16>
    %cst = arith.constant dense<0.000000e+00> : vector<256x256xf32>
    %3 = tpu.matmul %1, %2, %cst {dimension_numbers = #tpu.dot_dimension_numbers<[1], [0], [0], [1], [0, 0, 1, 1], [], []>} : vector<256x384xbf16>, vector<384x256xbf16>, vector<256x256xf32> -> vector<256x256xf32>
    %4 = vector.extract_strided_slice %3 {offsets = [0, 0], sizes = [256, 128], strides = [1, 1]} : vector<256x256xf32> to vector<256x128xf32>
    %5 = arith.truncf %4 : vector<256x128xf32> to vector<256x128xbf16>
    %6 = vector.extract_strided_slice %3 {offsets = [0, 128], sizes = [256, 128], strides = [1, 1]} : vector<256x256xf32> to vector<256x128xf32>
    %7 = arith.truncf %6 : vector<256x128xf32> to vector<256x128xbf16>
    %cst_4 = arith.constant dense<0.000000e+00> : vector<256x256xf32>
    %8 = tpu.matmul %5, %7, %cst_4 {dimension_numbers = #tpu.dot_dimension_numbers<[1], [1], [0], [0], [0, 0, 1, 0], [], []>} : vector<256x128xbf16>, vector<256x128xbf16>, vector<256x256xf32> -> vector<256x256xf32>
    %9 = tpu.iota {dimensions = array<i32: 0>} : vector<256x256xi32>
    %10 = tpu.iota {dimensions = array<i32: 1>} : vector<256x256xi32>
    %11 = arith.cmpi sle, %10, %9 : vector<256x256xi32>
    %cst_5 = arith.constant -1.000000e+30 : f32
    %12 = vector.broadcast %cst_5 : f32 to vector<256x256xf32>
    %13 = arith.select %11, %8, %12 : vector<256x256xi1>, vector<256x256xf32>
    %cst_6 = arith.constant dense<0xFF800000> : vector<256xf32>
    %14 = vector.multi_reduction <maximumf>, %13, %cst_6 [1] : vector<256x256xf32> to vector<256xf32>
    %15 = vector.shape_cast %14 : vector<256xf32> to vector<256x1xf32>
    %16 = vector.broadcast %15 : vector<256x1xf32> to vector<256x256xf32>
    %17 = arith.subf %13, %16 : vector<256x256xf32>
    %18 = math.exp %17 : vector<256x256xf32>
    %cst_7 = arith.constant dense<0.000000e+00> : vector<256xf32>
    %19 = vector.multi_reduction <add>, %18, %cst_7 [1] : vector<256x256xf32> to vector<256xf32>
    %20 = vector.shape_cast %19 : vector<256xf32> to vector<256x1xf32>
    %21 = arith.truncf %18 : vector<256x256xf32> to vector<256x256xbf16>
    %cst_8 = arith.constant dense<0.000000e+00> : vector<256x128xf32>
    %22 = tpu.matmul %21, %7, %cst_8 {dimension_numbers = #tpu.dot_dimension_numbers<[1], [0], [0], [1], [0, 0, 1, 1], [], []>} : vector<256x256xbf16>, vector<256x128xbf16>, vector<256x128xf32> -> vector<256x128xf32>
    %23 = tpu.reciprocal %20 : vector<256x1xf32> -> vector<256x1xf32>
    %24 = vector.extract_strided_slice %22 {offsets = [0, 64], sizes = [256, 64], strides = [1, 1]} : vector<256x128xf32> to vector<256x64xf32>
    %25 = vector.broadcast %23 : vector<256x1xf32> to vector<256x64xf32>
    %26 = arith.mulf %24, %25 : vector<256x64xf32>
    %c0_9 = arith.constant 0 : index
    %c0_10 = arith.constant 0 : index
    %c0_11 = arith.constant 0 : index
    %27 = vector.load %arg3[%c0_9, %c0_10, %c0_11] : memref<1x256x64xf32, #tpu.memory_space<vmem>>, vector<1x256x64xf32>
    %28 = vector.shape_cast %27 : vector<1x256x64xf32> to vector<256x64xf32>
    %29 = vector.shape_cast %26 : vector<256x64xf32> to vector<1x256x64xf32>
    tpu.vector_store %arg3[%c0_9, %c0_10, %c0_11], %29 {strides = array<i32>} : memref<1x256x64xf32, #tpu.memory_space<vmem>>, vector<1x256x64xf32>,
    return
  }
  func.func @transform_0(%arg0: i32) -> (i32, i32, i32) {
    %c0_i32 = arith.constant 0 : i32
    %c0_i32_0 = arith.constant 0 : i32
    %c0_i32_1 = arith.constant 0 : i32
    return %arg0, %c0_i32, %c0_i32_0 : i32, i32, i32
  }
  func.func @transform_1(%arg0: i32) -> (i32, i32) {
    %c0_i32 = arith.constant 0 : i32
    %c0_i32_0 = arith.constant 0 : i32
    %c0_i32_1 = arith.constant 0 : i32
    return %c0_i32, %c0_i32_0 : i32, i32
  }
  func.func @transform_2(%arg0: i32) -> (i32, i32, i32) {
    %c0_i32 = arith.constant 0 : i32
    %c0_i32_0 = arith.constant 0 : i32
    %c0_i32_1 = arith.constant 0 : i32
    return %arg0, %c0_i32, %c0_i32_0 : i32, i32, i32
  }
}

</mosaic_0001>

<llo_original>
// kernel: tpu_custom_call.1
$region0: #{tpu_custom_call.1}
  #allocation0 [shape = 'u32[]', space=smem, size = 0x4, offset = 0x4, fixed_abs, tag = 'smem constant byte address 0x4 - core index']
  #allocation1 [shape = 'u32[144,128]{1,0:T(1,128)}', space=vmem, size = 0x12000, scoped, tag = 'internal scratch']
  %s0 = inlined_call_operand.hbm [shape: bf16[2,256,384], index: 0, kind: input, shape index: {}]
  %s1 = inlined_call_operand.hbm [shape: bf16[384,256], index: 1, kind: input, shape index: {}]
  %s2 = inlined_call_operand.vmem [shape: f32[2,256,64], index: 2, kind: output, shape index: {}]
  %s3 = sld [smem:[#allocation0]]
  $region49: #{tpu_custom_call.1} parent=0
    _
  %s5 = ssub.s32 1, %s3
  %s6 = scalar_select 0, %s5, %s3
  $region1: #{tpu_custom_call.1} parent=0
    #allocation2 [shape = 'u8[393216]{0}', space=vmem, size = 0x60000, scoped, tag = 'input window, operand 0']
    #allocation3 [shape = 's32[2]{0}', space=sflag, size = 0x8, scoped, tag = 'scoped memory for tpu_custom_call.1']
    #allocation4 [shape = 'u8[196608]{0}', space=vmem, size = 0x30000, scoped, tag = 'input window, operand 1, single buffered']
    #allocation5 [shape = 's32[1]{0}', space=sflag, size = 0x4, scoped, tag = 'scoped memory for tpu_custom_call.1']
    %7 = vsyncpa [#allocation3], 0
    %s8 = scalar_lea.sflag [#allocation3], 1
    %9 = vsyncpa %s8, 0
    %10 = vsyncpa [#allocation5], 0
    loop: start=0, step=1, limit=4
    $region2: #{tpu_custom_call.1} parent=1 // loop_pre_header
      _
    $region3: #{tpu_custom_call.1} parent=1 // loop_header
      %s12 = sphi 0, %s16
      %p13 = scmp.ge.s32.totalorder %s12, 4
      %s22 = sphi 0, %s24
      %s25 = sphi 0, %s22
      %s26 = sphi 0, %s25
      %s42 = sphi 0, %s26
      %s46 = sphi 0, %s46
      %s48 = sphi 0, %s46
      %s49 = sphi 0, %s48
      %s63 = sphi 0, %s49
      %s69 = sphi 0, %s71
      %s72 = sphi 0, %s69
      %s73 = sphi 0, %s72
      %s89 = sphi 0, %s73
    $region4: #{tpu_custom_call.1} parent=1 // loop_header_branch
      %15 = sbr.rel (%p13) target = $region8
    $region5: #{tpu_custom_call.1} parent=1 // loop_body
      %s17 = ssub.s32 %s12, 1
      %s18 = ssub.s32 %s12, 2
      %s19 = sadd.s32 %s12, 1
      %s20 = ssub.s32 %s12, %s19
      %p21 = scmp.eq.s32.totalorder %s20, 0
      %s23 = sadd.s32 %s22, 1
      %s24 = scalar_select %p21, %s22, %s23
      %p27 = pneg %p21
      %p28 = scmp.eq.s32.totalorder %s12, 1
      %p29 = por %p27, %p28
      %p30 = scmp.ne.s32.totalorder %s22, %s25
      %p31 = scmp.eq.s32.totalorder %s12, 0
      %p32 = por %p30, %p31
      %p33 = scmp.ne.s32.totalorder %s22, %s25
      %p34 = scmp.eq.s32.totalorder %s17, 1
      %p35 = por %p33, %p34
      %p36 = scmp.ne.s32.totalorder %s25, %s26
      %p37 = scmp.eq.s32.totalorder %s17, 0
      %p38 = por %p36, %p37
      %p39 = scmp.ne.s32.totalorder %s25, %s26
      %p40 = scmp.eq.s32.totalorder %s18, 1
      %p41 = por %p39, %p40
      %p43 = scmp.ne.s32.totalorder %s26, %s42
      %p44 = scmp.eq.s32.totalorder %s18, 0
      %p45 = por %p43, %p44
      %s47 = sadd.s32 %s46, 1
      %p50 = scmp.eq.s32.totalorder %s12, 1
      %p51 = scmp.ne.s32.totalorder %s46, %s48
      %p52 = scmp.eq.s32.totalorder %s12, 0
      %p53 = por %p51, %p52
      %p54 = scmp.ne.s32.totalorder %s46, %s48
      %p55 = scmp.eq.s32.totalorder %s17, 1
      %p56 = por %p54, %p55
      %p57 = scmp.ne.s32.totalorder %s48, %s49
      %p58 = scmp.eq.s32.totalorder %s17, 0
      %p59 = por %p57, %p58
      %p60 = scmp.ne.s32.totalorder %s48, %s49
      %p61 = scmp.eq.s32.totalorder %s18, 1
      %p62 = por %p60, %p61
      %p64 = scmp.ne.s32.totalorder %s49, %s63
      %p65 = scmp.eq.s32.totalorder %s18, 0
      %p66 = por %p64, %p65
      %s67 = ssub.s32 %s12, %s19
      %p68 = scmp.eq.s32.totalorder %s67, 0
      %s70 = sadd.s32 %s69, 1
      %s71 = scalar_select %p68, %s69, %s70
      %p74 = pneg %p68
      %p75 = scmp.eq.s32.totalorder %s12, 1
      %p76 = por %p74, %p75
      %p77 = scmp.ne.s32.totalorder %s69, %s72
      %p78 = scmp.eq.s32.totalorder %s12, 0
      %p79 = por %p77, %p78
      %p80 = scmp.ne.s32.totalorder %s69, %s72
      %p81 = scmp.eq.s32.totalorder %s17, 1
      %p82 = por %p80, %p81
      %p83 = scmp.ne.s32.totalorder %s72, %s73
      %p84 = scmp.eq.s32.totalorder %s17, 0
      %p85 = por %p83, %p84
      %p86 = scmp.ne.s32.totalorder %s72, %s73
      %p87 = scmp.eq.s32.totalorder %s18, 1
      %p88 = por %p86, %p87
      %p90 = scmp.ne.s32.totalorder %s73, %s89
      %p91 = scmp.eq.s32.totalorder %s18, 0
      %p92 = por %p90, %p91
      %p93 = scmp.le.s32.totalorder 1, %s12
      %p94 = scmp.lt.s32.totalorder %s12, 3
      %p95 = pnand %p93, %p94
      %p96 = pneg %p95
      // Predicated region
      $region9: #{tpu_custom_call.1} parent=5 // pred_check
        _
      $region10: #{tpu_custom_call.1} parent=5 // pred_check_branch
        %98 = sbr.rel (%p95) target = $region12
      $region11: #{tpu_custom_call.1} parent=5 // pred_region
        %s99 = ssub.s32 %s12, 1
        // Predicated region
        $region13: #{tpu_custom_call.1} parent=11 // pred_check
          %p100 = pneg %p59
        $region14: #{tpu_custom_call.1} parent=11 // pred_check_branch
          %102 = sbr.rel (%p100) target = $region16
        $region15: #{tpu_custom_call.1} parent=11 // pred_region
          %s104 = ssub.s32 6144, 6144
          %105 = vsyncadd [#allocation5], %s104
          %s106 = sshll.u32 [#allocation4], 4
          %s107 = int_to_ptr.vmem [resolvable:$true] %s106
          %112 = dma.hbm_to_vmem [thread:$0]  %s1, 6144, %s107, [#allocation5], 128, 128, 8
        $region16: #{tpu_custom_call.1} parent=11 // pred_fallthru
          _
      $region12: #{tpu_custom_call.1} parent=5 // pred_fallthru
        _
      %p113 = scmp.lt.s32.totalorder %s12, 2
      // Predicated region
      $region17: #{tpu_custom_call.1} parent=5 // pred_check
        %p114 = pneg %p113
      $region18: #{tpu_custom_call.1} parent=5 // pred_check_branch
        %116 = sbr.rel (%p114) target = $region20
      $region19: #{tpu_custom_call.1} parent=5 // pred_region
        // Predicated region
        $region21: #{tpu_custom_call.1} parent=19 // pred_check
          %p117 = pneg %p32
        $region22: #{tpu_custom_call.1} parent=19 // pred_check_branch
          %119 = sbr.rel (%p117) target = $region24
        $region23: #{tpu_custom_call.1} parent=19 // pred_region
          %s120 = sand.u32 %s22, 1
          %s121 = scalar_lea.sflag [#allocation3], %s120
          %s122 = sand.u32 %s22, 1
          %s123 = smul.addr %s122, 384
          %s124 = scalar_lea.vmem [#allocation2], %s123
          %s126 = ssub.s32 6144, 6144
          %127 = vsyncadd %s121, %s126
          %s128 = smul.addr %s12, 96
          %s129 = smul.addr %s128, 64
          %s130 = scalar_lea.hbm %s0, %s129
          %s131 = sshll.u32 %s124, 4
          %s132 = int_to_ptr.vmem [resolvable:$true] %s131
          %137 = dma.hbm_to_vmem [thread:$0]  %s130, 6144, %s132, %s121, 192, 192, 12
        $region24: #{tpu_custom_call.1} parent=19 // pred_fallthru
          _
      $region20: #{tpu_custom_call.1} parent=5 // pred_fallthru
        _
      %p138 = scmp.le.s32.totalorder 1, %s12
      %p139 = scmp.lt.s32.totalorder %s12, 3
      %p140 = pnand %p138, %p139
      %p141 = pneg %p140
      // Predicated region
      $region25: #{tpu_custom_call.1} parent=5 // pred_check
        _
      $region26: #{tpu_custom_call.1} parent=5 // pred_check_branch
        %143 = sbr.rel (%p140) target = $region28
      $region27: #{tpu_custom_call.1} parent=5 // pred_region
        %s144 = ssub.s32 %s12, 1
        %s145 = sand.u32 %s25, 1
        %s146 = scalar_lea.sflag [#allocation3], %s145
        %s147 = sand.u32 %s25, 1
        %s148 = smul.addr %s147, 384
        %s149 = scalar_lea.vmem [#allocation2], %s148
        // Predicated region
        $region29: #{tpu_custom_call.1} parent=27 // pred_check
          %p150 = pneg %p38
        $region30: #{tpu_custom_call.1} parent=27 // pred_check_branch
          %152 = sbr.rel (%p150) target = $region32
        $region31: #{tpu_custom_call.1} parent=27 // pred_region
          %153 = dma.done %s146, 6144
        $region32: #{tpu_custom_call.1} parent=27 // pred_fallthru
          _
        // Predicated region
        $region33: #{tpu_custom_call.1} parent=27 // pred_check
          %p154 = pneg %p59
        $region34: #{tpu_custom_call.1} parent=27 // pred_check_branch
          %156 = sbr.rel (%p154) target = $region36
        $region35: #{tpu_custom_call.1} parent=27 // pred_region
          %157 = dma.done [#allocation5], 6144
        $region36: #{tpu_custom_call.1} parent=27 // pred_fallthru
          _
        %s158 = sand.u32 %s25, 1
        %s159 = scalar_lea.sflag [#allocation3], %s158
        %s160 = sand.u32 %s25, 1
        %s161 = smul.addr %s160, 384
        %s162 = scalar_lea.vmem [#allocation2], %s161
        %p163 = pneg %p38
        %p164 = pneg %p35
        %p165 = pneg %p59
        %p166 = pneg %p56
        %p167 = pneg %p85
        %p168 = pneg %p82
        %p169 = scmp.lt.s32.totalorder %s17, 1
        %s170 = scalar_select %p169, %s17, 1
        %s171 = smul.addr %s170, 32
        %s172 = smul.addr %s171, 8
        %s173 = scalar_lea.vmem %s2, %s172
        %p174 = scmp.lt.s32.totalorder %s17, 1
        %s175 = scalar_select %p174, %s17, 1
        %s176 = smul.addr %s175, 32
        %s177 = smul.addr %s176, 8
        %s178 = scalar_lea.vmem %s2, %s177
        %v180 = vld [vmem:[%s149] sm:$0xff]
        %v181 = vld [vmem:[%s149 + $0x8] sm:$0xf]
        %v182 = vld [vmem:[%s149 + $0xc] sm:$0xff]
        %v183 = vld [vmem:[%s149 + $0x14] sm:$0xf]
        %v184 = vld [vmem:[%s149 + $0x18] sm:$0xff]
        %v185 = vld [vmem:[%s149 + $0x20] sm:$0xf]
        %v186 = vld [vmem:[%s149 + $0x24] sm:$0xff]
        %v187 = vld [vmem:[%s149 + $0x2c] sm:$0xf]
        %v188 = vld [vmem:[%s149 + $0x30] sm:$0xff]
        %v189 = vld [vmem:[%s149 + $0x38] sm:$0xf]
        %v190 = vld [vmem:[%s149 + $0x3c] sm:$0xff]
        %v191 = vld [vmem:[%s149 + $0x44] sm:$0xf]
        %v192 = vld [vmem:[%s149 + $0x48] sm:$0xff]
        %v193 = vld [vmem:[%s149 + $0x50] sm:$0xf]
        %v194 = vld [vmem:[%s149 + $0x54] sm:$0xff]
        %v195 = vld [vmem:[%s149 + $0x5c] sm:$0xf]
        %v196 = vld [vmem:[%s149 + $0x60] sm:$0xff]
        %v197 = vld [vmem:[%s149 + $0x68] sm:$0xf]
        %v198 = vld [vmem:[%s149 + $0x6c] sm:$0xff]
        %v199 = vld [vmem:[%s149 + $0x74] sm:$0xf]
        %v200 = vld [vmem:[%s149 + $0x78] sm:$0xff]
        %v201 = vld [vmem:[%s149 + $0x80] sm:$0xf]
        %v202 = vld [vmem:[%s149 + $0x84] sm:$0xff]
        %v203 = vld [vmem:[%s149 + $0x8c] sm:$0xf]
        %v204 = vld [vmem:[%s149 + $0x90] sm:$0xff]
        %v205 = vld [vmem:[%s149 + $0x98] sm:$0xf]
        %v206 = vld [vmem:[%s149 + $0x9c] sm:$0xff]
        %v207 = vld [vmem:[%s149 + $0xa4] sm:$0xf]
        %v208 = vld [vmem:[%s149 + $0xa8] sm:$0xff]
        %v209 = vld [vmem:[%s149 + $0xb0] sm:$0xf]
        %v210 = vld [vmem:[%s149 + $0xb4] sm:$0xff]
        %v211 = vld [vmem:[%s149 + $0xbc] sm:$0xf]
        %v212 = vld [vmem:[%s149 + $0xc0] sm:$0xff]
        %v213 = vld [vmem:[%s149 + $0xc8] sm:$0xf]
        %v214 = vld [vmem:[%s149 + $0xcc] sm:$0xff]
        %v215 = vld [vmem:[%s149 + $0xd4] sm:$0xf]
        %v216 = vld [vmem:[%s149 + $0xd8] sm:$0xff]
        %v217 = vld [vmem:[%s149 + $0xe0] sm:$0xf]
        %v218 = vld [vmem:[%s149 + $0xe4] sm:$0xff]
        %v219 = vld [vmem:[%s149 + $0xec] sm:$0xf]
        %v220 = vld [vmem:[%s149 + $0xf0] sm:$0xff]
        %v221 = vld [vmem:[%s149 + $0xf8] sm:$0xf]
        %v222 = vld [vmem:[%s149 + $0xfc] sm:$0xff]
        %v223 = vld [vmem:[%s149 + $0x104] sm:$0xf]
        %v224 = vld [vmem:[%s149 + $0x108] sm:$0xff]
        %v225 = vld [vmem:[%s149 + $0x110] sm:$0xf]
        %v226 = vld [vmem:[%s149 + $0x114] sm:$0xff]
        %v227 = vld [vmem:[%s149 + $0x11c] sm:$0xf]
        %v228 = vld [vmem:[%s149 + $0x120] sm:$0xff]
        %v229 = vld [vmem:[%s149 + $0x128] sm:$0xf]
        %v230 = vld [vmem:[%s149 + $0x12c] sm:$0xff]
        %v231 = vld [vmem:[%s149 + $0x134] sm:$0xf]
        %v232 = vld [vmem:[%s149 + $0x138] sm:$0xff]
        %v233 = vld [vmem:[%s149 + $0x140] sm:$0xf]
        %v234 = vld [vmem:[%s149 + $0x144] sm:$0xff]
        %v235 = vld [vmem:[%s149 + $0x14c] sm:$0xf]
        %v236 = vld [vmem:[%s149 + $0x150] sm:$0xff]
        %v237 = vld [vmem:[%s149 + $0x158] sm:$0xf]
        %v238 = vld [vmem:[%s149 + $0x15c] sm:$0xff]
        %v239 = vld [vmem:[%s149 + $0x164] sm:$0xf]
        %v240 = vld [vmem:[%s149 + $0x168] sm:$0xff]
        %v241 = vld [vmem:[%s149 + $0x170] sm:$0xf]
        %v242 = vld [vmem:[%s149 + $0x174] sm:$0xff]
        %v243 = vld [vmem:[%s149 + $0x17c] sm:$0xf]
        %v244 = vld [vmem:[#allocation4] sm:$0xff]
        %v245 = vld [vmem:[#allocation4 + $0x8] sm:$0xff]
        %v246 = vld [vmem:[#allocation4 + $0x10] sm:$0xff]
        %v247 = vld [vmem:[#allocation4 + $0x18] sm:$0xff]
        %v248 = vld [vmem:[#allocation4 + $0x20] sm:$0xff]
        %v249 = vld [vmem:[#allocation4 + $0x28] sm:$0xff]
        %v250 = vld [vmem:[#allocation4 + $0x30] sm:$0xff]
        %v251 = vld [vmem:[#allocation4 + $0x38] sm:$0xff]
        %v252 = vld [vmem:[#allocation4 + $0x40] sm:$0xff]
        %v253 = vld [vmem:[#allocation4 + $0x48] sm:$0xff]
        %v254 = vld [vmem:[#allocation4 + $0x50] sm:$0xff]
        %v255 = vld [vmem:[#allocation4 + $0x58] sm:$0xff]
        %v256 = vld [vmem:[#allocation4 + $0x60] sm:$0xff]
        %v257 = vld [vmem:[#allocation4 + $0x68] sm:$0xff]
        %v258 = vld [vmem:[#allocation4 + $0x70] sm:$0xff]
        %v259 = vld [vmem:[#allocation4 + $0x78] sm:$0xff]
        %v260 = vld [vmem:[#allocation4 + $0x80] sm:$0xff]
        %v261 = vld [vmem:[#allocation4 + $0x88] sm:$0xff]
        %v262 = vld [vmem:[#allocation4 + $0x90] sm:$0xff]
        %v263 = vld [vmem:[#allocation4 + $0x98] sm:$0xff]
        %v264 = vld [vmem:[#allocation4 + $0xa0] sm:$0xff]
        %v265 = vld [vmem:[#allocation4 + $0xa8] sm:$0xff]
        %v266 = vld [vmem:[#allocation4 + $0xb0] sm:$0xff]
        %v267 = vld [vmem:[#allocation4 + $0xb8] sm:$0xff]
        %v268 = vld [vmem:[#allocation4 + $0xc0] sm:$0xff]
        %v269 = vld [vmem:[#allocation4 + $0xc8] sm:$0xff]
        %v270 = vld [vmem:[#allocation4 + $0xd0] sm:$0xff]
        %v271 = vld [vmem:[#allocation4 + $0xd8] sm:$0xff]
        %v272 = vld [vmem:[#allocation4 + $0xe0] sm:$0xff]
        %v273 = vld [vmem:[#allocation4 + $0xe8] sm:$0xff]
        %v274 = vld [vmem:[#allocation4 + $0xf0] sm:$0xff]
        %v275 = vld [vmem:[#allocation4 + $0xf8] sm:$0xff]
        %v276 = vld [vmem:[#allocation4 + $0x100] sm:$0xff]
        %v277 = vld [vmem:[#allocation4 + $0x108] sm:$0xff]
        %v278 = vld [vmem:[#allocation4 + $0x110] sm:$0xff]
        %v279 = vld [vmem:[#allocation4 + $0x118] sm:$0xff]
        %v280 = vld [vmem:[#allocation4 + $0x120] sm:$0xff]
        %v281 = vld [vmem:[#allocation4 + $0x128] sm:$0xff]
        %v282 = vld [vmem:[#allocation4 + $0x130] sm:$0xff]
        %v283 = vld [vmem:[#allocation4 + $0x138] sm:$0xff]
        %v284 = vld [vmem:[#allocation4 + $0x140] sm:$0xff]
        %v285 = vld [vmem:[#allocation4 + $0x148] sm:$0xff]
        %v286 = vld [vmem:[#allocation4 + $0x150] sm:$0xff]
        %v287 = vld [vmem:[#allocation4 + $0x158] sm:$0xff]
        %v288 = vld [vmem:[#allocation4 + $0x160] sm:$0xff]
        %v289 = vld [vmem:[#allocation4 + $0x168] sm:$0xff]
        %v290 = vld [vmem:[#allocation4 + $0x170] sm:$0xff]
        %v291 = vld [vmem:[#allocation4 + $0x178] sm:$0xff]
        %v356 = vunpack.c.l.b16 %v180
        %v357 = vunpack.c.h.b16 %v180
        %v358 = vunpack.c.l.b16 %v181
        %v359 = vunpack.c.l.b16 %v182
        %v360 = vunpack.c.h.b16 %v182
        %v361 = vunpack.c.l.b16 %v183
        %v362 = vunpack.c.l.b16 %v184
        %v363 = vunpack.c.h.b16 %v184
        %v364 = vunpack.c.l.b16 %v185
        %v365 = vunpack.c.l.b16 %v186
        %v366 = vunpack.c.h.b16 %v186
        %v367 = vunpack.c.l.b16 %v187
        %v368 = vunpack.c.l.b16 %v188
        %v369 = vunpack.c.h.b16 %v188
        %v370 = vunpack.c.l.b16 %v189
        %v371 = vunpack.c.l.b16 %v190
        %v372 = vunpack.c.h.b16 %v190
        %v373 = vunpack.c.l.b16 %v191
        %v374 = vunpack.c.l.b16 %v192
        %v375 = vunpack.c.h.b16 %v192
        %v376 = vunpack.c.l.b16 %v193
        %v377 = vunpack.c.l.b16 %v194
        %v378 = vunpack.c.h.b16 %v194
        %v379 = vunpack.c.l.b16 %v195
        %v380 = vunpack.c.l.b16 %v196
        %v381 = vunpack.c.h.b16 %v196
        %v382 = vunpack.c.l.b16 %v197
        %v383 = vunpack.c.l.b16 %v198
        %v384 = vunpack.c.h.b16 %v198
        %v385 = vunpack.c.l.b16 %v199
        %v386 = vunpack.c.l.b16 %v200
        %v387 = vunpack.c.h.b16 %v200
        %v388 = vunpack.c.l.b16 %v201
        %v389 = vunpack.c.l.b16 %v202
        %v390 = vunpack.c.h.b16 %v202
        %v391 = vunpack.c.l.b16 %v203
        %v392 = vunpack.c.l.b16 %v204
        %v393 = vunpack.c.h.b16 %v204
        %v394 = vunpack.c.l.b16 %v205
        %v395 = vunpack.c.l.b16 %v206
        %v396 = vunpack.c.h.b16 %v206
        %v397 = vunpack.c.l.b16 %v207
        %v398 = vunpack.c.l.b16 %v208
        %v399 = vunpack.c.h.b16 %v208
        %v400 = vunpack.c.l.b16 %v209
        %v401 = vunpack.c.l.b16 %v210
        %v402 = vunpack.c.h.b16 %v210
        %v403 = vunpack.c.l.b16 %v211
        %v404 = vunpack.c.l.b16 %v212
        %v405 = vunpack.c.h.b16 %v212
        %v406 = vunpack.c.l.b16 %v213
        %v407 = vunpack.c.l.b16 %v214
        %v408 = vunpack.c.h.b16 %v214
        %v409 = vunpack.c.l.b16 %v215
        %v410 = vunpack.c.l.b16 %v216
        %v411 = vunpack.c.h.b16 %v216
        %v412 = vunpack.c.l.b16 %v217
        %v413 = vunpack.c.l.b16 %v218
        %v414 = vunpack.c.h.b16 %v218
        %v415 = vunpack.c.l.b16 %v219
        %v416 = vunpack.c.l.b16 %v220
        %v417 = vunpack.c.h.b16 %v220
        %v418 = vunpack.c.l.b16 %v221
        %v419 = vunpack.c.l.b16 %v222
        %v420 = vunpack.c.h.b16 %v222
        %v421 = vunpack.c.l.b16 %v223
        %v422 = vunpack.c.l.b16 %v224
        %v423 = vunpack.c.h.b16 %v224
        %v424 = vunpack.c.l.b16 %v225
        %v425 = vunpack.c.l.b16 %v226
        %v426 = vunpack.c.h.b16 %v226
        %v427 = vunpack.c.l.b16 %v227
        %v428 = vunpack.c.l.b16 %v228
        %v429 = vunpack.c.h.b16 %v228
        %v430 = vunpack.c.l.b16 %v229
        %v431 = vunpack.c.l.b16 %v230
        %v432 = vunpack.c.h.b16 %v230
        %v433 = vunpack.c.l.b16 %v231
        %v434 = vunpack.c.l.b16 %v232
        %v435 = vunpack.c.h.b16 %v232
        %v436 = vunpack.c.l.b16 %v233
        %v437 = vunpack.c.l.b16 %v234
        %v438 = vunpack.c.h.b16 %v234
        %v439 = vunpack.c.l.b16 %v235
        %v440 = vunpack.c.l.b16 %v236
        %v441 = vunpack.c.h.b16 %v236
        %v442 = vunpack.c.l.b16 %v237
        %v443 = vunpack.c.l.b16 %v238
        %v444 = vunpack.c.h.b16 %v238
        %v445 = vunpack.c.l.b16 %v239
        %v446 = vunpack.c.l.b16 %v240
        %v447 = vunpack.c.h.b16 %v240
        %v448 = vunpack.c.l.b16 %v241
        %v449 = vunpack.c.l.b16 %v242
        %v450 = vunpack.c.h.b16 %v242
        %v451 = vunpack.c.l.b16 %v243
        %v452 = vpack.c.b16 %v359, %v356
        %v453 = vpack.c.b16 %v360, %v357
        %v454 = vpack.c.b16 %v361, %v358
        %v455 = vpack.c.b16 %v365, %v362
        %v456 = vpack.c.b16 %v366, %v363
        %v457 = vpack.c.b16 %v367, %v364
        %v458 = vpack.c.b16 %v371, %v368
        %v459 = vpack.c.b16 %v372, %v369
        %v460 = vpack.c.b16 %v373, %v370
        %v461 = vpack.c.b16 %v377, %v374
        %v462 = vpack.c.b16 %v378, %v375
        %v463 = vpack.c.b16 %v379, %v376
        %v464 = vpack.c.b16 %v383, %v380
        %v465 = vpack.c.b16 %v384, %v381
        %v466 = vpack.c.b16 %v385, %v382
        %v467 = vpack.c.b16 %v389, %v386
        %v468 = vpack.c.b16 %v390, %v387
        %v469 = vpack.c.b16 %v391, %v388
        %v470 = vpack.c.b16 %v395, %v392
        %v471 = vpack.c.b16 %v396, %v393
        %v472 = vpack.c.b16 %v397, %v394
        %v473 = vpack.c.b16 %v401, %v398
        %v474 = vpack.c.b16 %v402, %v399
        %v475 = vpack.c.b16 %v403, %v400
        %v476 = vpack.c.b16 %v407, %v404
        %v477 = vpack.c.b16 %v408, %v405
        %v478 = vpack.c.b16 %v409, %v406
        %v479 = vpack.c.b16 %v413, %v410
        %v480 = vpack.c.b16 %v414, %v411
        %v481 = vpack.c.b16 %v415, %v412
        %v482 = vpack.c.b16 %v419, %v416
        %v483 = vpack.c.b16 %v420, %v417
        %v484 = vpack.c.b16 %v421, %v418
        %v485 = vpack.c.b16 %v425, %v422
        %v486 = vpack.c.b16 %v426, %v423
        %v487 = vpack.c.b16 %v427, %v424
        %v488 = vpack.c.b16 %v431, %v428
        %v489 = vpack.c.b16 %v432, %v429
        %v490 = vpack.c.b16 %v433, %v430
        %v491 = vpack.c.b16 %v437, %v434
        %v492 = vpack.c.b16 %v438, %v435
        %v493 = vpack.c.b16 %v439, %v436
        %v494 = vpack.c.b16 %v443, %v440
        %v495 = vpack.c.b16 %v444, %v441
        %v496 = vpack.c.b16 %v445, %v442
        %v497 = vpack.c.b16 %v449, %v446
        %v498 = vpack.c.b16 %v450, %v447
        %v499 = vpack.c.b16 %v451, %v448
        %v596 = vunpack.c.l.b16 %v244
        %v597 = vunpack.c.h.b16 %v244
        %v598 = vunpack.c.l.b16 %v245
        %v599 = vunpack.c.h.b16 %v245
        %v600 = vunpack.c.l.b16 %v246
        %v601 = vunpack.c.h.b16 %v246
        %v602 = vunpack.c.l.b16 %v247
        %v603 = vunpack.c.h.b16 %v247
        %v604 = vunpack.c.l.b16 %v248
        %v605 = vunpack.c.h.b16 %v248
        %v606 = vunpack.c.l.b16 %v249
        %v607 = vunpack.c.h.b16 %v249
        %v608 = vunpack.c.l.b16 %v250
        %v609 = vunpack.c.h.b16 %v250
        %v610 = vunpack.c.l.b16 %v251
        %v611 = vunpack.c.h.b16 %v251
        %v612 = vunpack.c.l.b16 %v252
        %v613 = vunpack.c.h.b16 %v252
        %v614 = vunpack.c.l.b16 %v253
        %v615 = vunpack.c.h.b16 %v253
        %v616 = vunpack.c.l.b16 %v254
        %v617 = vunpack.c.h.b16 %v254
        %v618 = vunpack.c.l.b16 %v255
        %v619 = vunpack.c.h.b16 %v255
        %v620 = vunpack.c.l.b16 %v256
        %v621 = vunpack.c.h.b16 %v256
        %v622 = vunpack.c.l.b16 %v257
        %v623 = vunpack.c.h.b16 %v257
        %v624 = vunpack.c.l.b16 %v258
        %v625 = vunpack.c.h.b16 %v258
        %v626 = vunpack.c.l.b16 %v259
        %v627 = vunpack.c.h.b16 %v259
        %v628 = vunpack.c.l.b16 %v260
        %v629 = vunpack.c.h.b16 %v260
        %v630 = vunpack.c.l.b16 %v261
        %v631 = vunpack.c.h.b16 %v261
        %v632 = vunpack.c.l.b16 %v262
        %v633 = vunpack.c.h.b16 %v262
        %v634 = vunpack.c.l.b16 %v263
        %v635 = vunpack.c.h.b16 %v263
        %v636 = vunpack.c.l.b16 %v264
        %v637 = vunpack.c.h.b16 %v264
        %v638 = vunpack.c.l.b16 %v265
        %v639 = vunpack.c.h.b16 %v265
        %v640 = vunpack.c.l.b16 %v266
        %v641 = vunpack.c.h.b16 %v266
        %v642 = vunpack.c.l.b16 %v267
        %v643 = vunpack.c.h.b16 %v267
        %v644 = vunpack.c.l.b16 %v268
        %v645 = vunpack.c.h.b16 %v268
        %v646 = vunpack.c.l.b16 %v269
        %v647 = vunpack.c.h.b16 %v269
        %v648 = vunpack.c.l.b16 %v270
        %v649 = vunpack.c.h.b16 %v270
        %v650 = vunpack.c.l.b16 %v271
        %v651 = vunpack.c.h.b16 %v271
        %v652 = vunpack.c.l.b16 %v272
        %v653 = vunpack.c.h.b16 %v272
        %v654 = vunpack.c.l.b16 %v273
        %v655 = vunpack.c.h.b16 %v273
        %v656 = vunpack.c.l.b16 %v274
        %v657 = vunpack.c.h.b16 %v274
        %v658 = vunpack.c.l.b16 %v275
        %v659 = vunpack.c.h.b16 %v275
        %v660 = vunpack.c.l.b16 %v276
        %v661 = vunpack.c.h.b16 %v276
        %v662 = vunpack.c.l.b16 %v277
        %v663 = vunpack.c.h.b16 %v277
        %v664 = vunpack.c.l.b16 %v278
        %v665 = vunpack.c.h.b16 %v278
        %v666 = vunpack.c.l.b16 %v279
        %v667 = vunpack.c.h.b16 %v279
        %v668 = vunpack.c.l.b16 %v280
        %v669 = vunpack.c.h.b16 %v280
        %v670 = vunpack.c.l.b16 %v281
        %v671 = vunpack.c.h.b16 %v281
        %v672 = vunpack.c.l.b16 %v282
        %v673 = vunpack.c.h.b16 %v282
        %v674 = vunpack.c.l.b16 %v283
        %v675 = vunpack.c.h.b16 %v283
        %v676 = vunpack.c.l.b16 %v284
        %v677 = vunpack.c.h.b16 %v284
        %v678 = vunpack.c.l.b16 %v285
        %v679 = vunpack.c.h.b16 %v285
        %v680 = vunpack.c.l.b16 %v286
        %v681 = vunpack.c.h.b16 %v286
        %v682 = vunpack.c.l.b16 %v287
        %v683 = vunpack.c.h.b16 %v287
        %v684 = vunpack.c.l.b16 %v288
        %v685 = vunpack.c.h.b16 %v288
        %v686 = vunpack.c.l.b16 %v289
        %v687 = vunpack.c.h.b16 %v289
        %v688 = vunpack.c.l.b16 %v290
        %v689 = vunpack.c.h.b16 %v290
        %v690 = vunpack.c.l.b16 %v291
        %v691 = vunpack.c.h.b16 %v291
        %v692 = vpack.c.b16 %v598, %v596
        %v693 = vpack.c.b16 %v599, %v597
        %v694 = vpack.c.b16 %v602, %v600
        %v695 = vpack.c.b16 %v603, %v601
        %v696 = vpack.c.b16 %v606, %v604
        %v697 = vpack.c.b16 %v607, %v605
        %v698 = vpack.c.b16 %v610, %v608
        %v699 = vpack.c.b16 %v611, %v609
        %v700 = vpack.c.b16 %v614, %v612
        %v701 = vpack.c.b16 %v615, %v613
        %v702 = vpack.c.b16 %v618, %v616
        %v703 = vpack.c.b16 %v619, %v617
        %v704 = vpack.c.b16 %v622, %v620
        %v705 = vpack.c.b16 %v623, %v621
        %v706 = vpack.c.b16 %v626, %v624
        %v707 = vpack.c.b16 %v627, %v625
        %v708 = vpack.c.b16 %v630, %v628
        %v709 = vpack.c.b16 %v631, %v629
        %v710 = vpack.c.b16 %v634, %v632
        %v711 = vpack.c.b16 %v635, %v633
        %v712 = vpack.c.b16 %v638, %v636
        %v713 = vpack.c.b16 %v639, %v637
        %v714 = vpack.c.b16 %v642, %v640
        %v715 = vpack.c.b16 %v643, %v641
        %v716 = vpack.c.b16 %v646, %v644
        %v717 = vpack.c.b16 %v647, %v645
        %v718 = vpack.c.b16 %v650, %v648
        %v719 = vpack.c.b16 %v651, %v649
        %v720 = vpack.c.b16 %v654, %v652
        %v721 = vpack.c.b16 %v655, %v653
        %v722 = vpack.c.b16 %v658, %v656
        %v723 = vpack.c.b16 %v659, %v657
        %v724 = vpack.c.b16 %v662, %v660
        %v725 = vpack.c.b16 %v663, %v661
        %v726 = vpack.c.b16 %v666, %v664
        %v727 = vpack.c.b16 %v667, %v665
        %v728 = vpack.c.b16 %v670, %v668
        %v729 = vpack.c.b16 %v671, %v669
        %v730 = vpack.c.b16 %v674, %v672
        %v731 = vpack.c.b16 %v675, %v673
        %v732 = vpack.c.b16 %v678, %v676
        %v733 = vpack.c.b16 %v679, %v677
        %v734 = vpack.c.b16 %v682, %v680
        %v735 = vpack.c.b16 %v683, %v681
        %v736 = vpack.c.b16 %v686, %v684
        %v737 = vpack.c.b16 %v687, %v685
        %v738 = vpack.c.b16 %v690, %v688
        %v739 = vpack.c.b16 %v691, %v689
        %788 = vmatprep.subr.bf16.mxu0 %v707
        %789 = vmatpush1.bf16.msra.mxu0 %v706
        %790 = vmatprep.subr.bf16.mxu0 %v705
        %791 = vmatpush1.bf16.msra.mxu0 %v704
        %792 = vmatprep.subr.bf16.mxu0 %v703
        %793 = vmatpush1.bf16.msra.mxu0 %v702
        %794 = vmatprep.subr.bf16.mxu0 %v701
        %795 = vmatpush1.bf16.msra.mxu0 %v700
        %796 = vmatprep.subr.bf16.mxu0 %v699
        %797 = vmatpush1.bf16.msra.mxu0 %v698
        %798 = vmatprep.subr.bf16.mxu0 %v697
        %799 = vmatpush1.bf16.msra.mxu0 %v696
        %800 = vmatprep.subr.bf16.mxu0 %v695
        %801 = vmatpush1.bf16.msra.mxu0 %v694
        %802 = vmatprep.subr.bf16.mxu0 %v693
        %803 = vmatpush1.bf16.msra.mxu0 %v692
        %804 = vmatprep.subr.bf16.mxu0 %v723
        %805 = vmatpush2.bf16.msra.mxu0 %v722
        %806 = vmatprep.subr.bf16.mxu0 %v721
        %807 = vmatpush2.bf16.msra.mxu0 %v720
        %808 = vmatprep.subr.bf16.mxu0 %v719
        %809 = vmatpush2.bf16.msra.mxu0 %v718
        %810 = vmatprep.subr.bf16.mxu0 %v717
        %811 = vmatpush2.bf16.msra.mxu0 %v716
        %812 = vmatprep.subr.bf16.mxu0 %v715
        %813 = vmatpush2.bf16.msra.mxu0 %v714
        %814 = vmatprep.subr.bf16.mxu0 %v713
        %815 = vmatpush2.bf16.msra.mxu0 %v712
        %816 = vmatprep.subr.bf16.mxu0 %v711
        %817 = vmatpush2.bf16.msra.mxu0 %v710
        %818 = vmatprep.subr.bf16.mxu0 %v709
        %819 = vmatpush2.bf16.msra.mxu0 %v708
        %820 = vmatprep.mubr.bf16.mxu0 %v453
        %821 = vmatmul.mubr.bf16.gmra.mxu0 %v452
        %v822 = vpop.f32.mrf.mxu0
        %v823 = vadd.f32 0.0, %v822
        %v824 = vpop.f32.mrf.mxu0
        %v825 = vadd.f32 0.0, %v824
        %v826 = vpop.f32.mrf.mxu0
        %v827 = vadd.f32 0.0, %v826
        %v828 = vpop.f32.mrf.mxu0
        %v829 = vadd.f32 0.0, %v828
        %830 = vmatprep.mubr.bf16.mxu0 %v456
        %831 = vmatmul.mubr.bf16.gmra.mxu0 %v455
        %v832 = vpop.f32.mrf.mxu0
        %v833 = vadd.f32 0.0, %v832
        %v834 = vpop.f32.mrf.mxu0
        %v835 = vadd.f32 0.0, %v834
        %v836 = vpop.f32.mrf.mxu0
        %v837 = vadd.f32 0.0, %v836
        %v838 = vpop.f32.mrf.mxu0
        %v839 = vadd.f32 0.0, %v838
        %840 = vmatprep.mubr.bf16.mxu0 %v459
        %841 = vmatmul.mubr.bf16.gmra.mxu0 %v458
        %v842 = vpop.f32.mrf.mxu0
        %v843 = vadd.f32 0.0, %v842
        %v844 = vpop.f32.mrf.mxu0
        %v845 = vadd.f32 0.0, %v844
        %v846 = vpop.f32.mrf.mxu0
        %v847 = vadd.f32 0.0, %v846
        %v848 = vpop.f32.mrf.mxu0
        %v849 = vadd.f32 0.0, %v848
        %850 = vmatprep.mubr.bf16.mxu0 %v462
        %851 = vmatmul.mubr.bf16.gmra.mxu0 %v461
        %v852 = vpop.f32.mrf.mxu0
        %v853 = vadd.f32 0.0, %v852
        %v854 = vpop.f32.mrf.mxu0
        %v855 = vadd.f32 0.0, %v854
        %v856 = vpop.f32.mrf.mxu0
        %v857 = vadd.f32 0.0, %v856
        %v858 = vpop.f32.mrf.mxu0
        %v859 = vadd.f32 0.0, %v858
        %860 = vmatprep.mubr.bf16.mxu0 %v465
        %861 = vmatmul.mubr.bf16.gmra.mxu0 %v464
        %v862 = vpop.f32.mrf.mxu0
        %v863 = vadd.f32 0.0, %v862
        %v864 = vpop.f32.mrf.mxu0
        %v865 = vadd.f32 0.0, %v864
        %v866 = vpop.f32.mrf.mxu0
        %v867 = vadd.f32 0.0, %v866
        %v868 = vpop.f32.mrf.mxu0
        %v869 = vadd.f32 0.0, %v868
        %870 = vmatprep.mubr.bf16.mxu0 %v468
        %871 = vmatmul.mubr.bf16.gmra.mxu0 %v467
        %v872 = vpop.f32.mrf.mxu0
        %v873 = vadd.f32 0.0, %v872
        %v874 = vpop.f32.mrf.mxu0
        %v875 = vadd.f32 0.0, %v874
        %v876 = vpop.f32.mrf.mxu0
        %v877 = vadd.f32 0.0, %v876
        %v878 = vpop.f32.mrf.mxu0
        %v879 = vadd.f32 0.0, %v878
        %880 = vmatprep.mubr.bf16.mxu0 %v471
        %881 = vmatmul.mubr.bf16.gmra.mxu0 %v470
        %v882 = vpop.f32.mrf.mxu0
        %v883 = vadd.f32 0.0, %v882
        %v884 = vpop.f32.mrf.mxu0
        %v885 = vadd.f32 0.0, %v884
        %v886 = vpop.f32.mrf.mxu0
        %v887 = vadd.f32 0.0, %v886
        %v888 = vpop.f32.mrf.mxu0
        %v889 = vadd.f32 0.0, %v888
        %890 = vmatprep.mubr.bf16.mxu0 %v474
        %891 = vmatmul.mubr.bf16.gmra.mxu0 %v473
        %v892 = vpop.f32.mrf.mxu0
        %v893 = vadd.f32 0.0, %v892
        %v894 = vpop.f32.mrf.mxu0
        %v895 = vadd.f32 0.0, %v894
        %v896 = vpop.f32.mrf.mxu0
        %v897 = vadd.f32 0.0, %v896
        %v898 = vpop.f32.mrf.mxu0
        %v899 = vadd.f32 0.0, %v898
        %900 = vmatprep.mubr.bf16.mxu0 %v477
        %901 = vmatmul.mubr.bf16.gmra.mxu0 %v476
        %v902 = vpop.f32.mrf.mxu0
        %v903 = vadd.f32 0.0, %v902
        %v904 = vpop.f32.mrf.mxu0
        %v905 = vadd.f32 0.0, %v904
        %v906 = vpop.f32.mrf.mxu0
        %v907 = vadd.f32 0.0, %v906
        %v908 = vpop.f32.mrf.mxu0
        %v909 = vadd.f32 0.0, %v908
        %910 = vmatprep.mubr.bf16.mxu0 %v480
        %911 = vmatmul.mubr.bf16.gmra.mxu0 %v479
        %v912 = vpop.f32.mrf.mxu0
        %v913 = vadd.f32 0.0, %v912
        %v914 = vpop.f32.mrf.mxu0
        %v915 = vadd.f32 0.0, %v914
        %v916 = vpop.f32.mrf.mxu0
        %v917 = vadd.f32 0.0, %v916
        %v918 = vpop.f32.mrf.mxu0
        %v919 = vadd.f32 0.0, %v918
        %920 = vmatprep.mubr.bf16.mxu0 %v483
        %921 = vmatmul.mubr.bf16.gmra.mxu0 %v482
        %v922 = vpop.f32.mrf.mxu0
        %v923 = vadd.f32 0.0, %v922
        %v924 = vpop.f32.mrf.mxu0
        %v925 = vadd.f32 0.0, %v924
        %v926 = vpop.f32.mrf.mxu0
        %v927 = vadd.f32 0.0, %v926
        %v928 = vpop.f32.mrf.mxu0
        %v929 = vadd.f32 0.0, %v928
        %930 = vmatprep.mubr.bf16.mxu0 %v486
        %931 = vmatmul.mubr.bf16.gmra.mxu0 %v485
        %v932 = vpop.f32.mrf.mxu0
        %v933 = vadd.f32 0.0, %v932
        %v934 = vpop.f32.mrf.mxu0
        %v935 = vadd.f32 0.0, %v934
        %v936 = vpop.f32.mrf.mxu0
        %v937 = vadd.f32 0.0, %v936
        %v938 = vpop.f32.mrf.mxu0
        %v939 = vadd.f32 0.0, %v938
        %940 = vmatprep.mubr.bf16.mxu0 %v489
        %941 = vmatmul.mubr.bf16.gmra.mxu0 %v488
        %v942 = vpop.f32.mrf.mxu0
        %v943 = vadd.f32 0.0, %v942
        %v944 = vpop.f32.mrf.mxu0
        %v945 = vadd.f32 0.0, %v944
        %v946 = vpop.f32.mrf.mxu0
        %v947 = vadd.f32 0.0, %v946
        %v948 = vpop.f32.mrf.mxu0
        %v949 = vadd.f32 0.0, %v948
        %950 = vmatprep.mubr.bf16.mxu0 %v492
        %951 = vmatmul.mubr.bf16.gmra.mxu0 %v491
        %v952 = vpop.f32.mrf.mxu0
        %v953 = vadd.f32 0.0, %v952
        %v954 = vpop.f32.mrf.mxu0
        %v955 = vadd.f32 0.0, %v954
        %v956 = vpop.f32.mrf.mxu0
        %v957 = vadd.f32 0.0, %v956
        %v958 = vpop.f32.mrf.mxu0
        %v959 = vadd.f32 0.0, %v958
        %960 = vmatprep.mubr.bf16.mxu0 %v495
        %961 = vmatmul.mubr.bf16.gmra.mxu0 %v494
        %v962 = vpop.f32.mrf.mxu0
        %v963 = vadd.f32 0.0, %v962
        %v964 = vpop.f32.mrf.mxu0
        %v965 = vadd.f32 0.0, %v964
        %v966 = vpop.f32.mrf.mxu0
        %v967 = vadd.f32 0.0, %v966
        %v968 = vpop.f32.mrf.mxu0
        %v969 = vadd.f32 0.0, %v968
        %970 = vmatprep.mubr.bf16.mxu0 %v498
        %971 = vmatmul.mubr.bf16.gmra.mxu0 %v497
        %v972 = vpop.f32.mrf.mxu0
        %v973 = vadd.f32 0.0, %v972
        %v974 = vpop.f32.mrf.mxu0
        %v975 = vadd.f32 0.0, %v974
        %v976 = vpop.f32.mrf.mxu0
        %v977 = vadd.f32 0.0, %v976
        %v978 = vpop.f32.mrf.mxu0
        %v979 = vadd.f32 0.0, %v978
        %980 = vdwg.mxu0
        %981 = vmatprep.subr.bf16.mxu0 %v739
        %982 = vmatpush1.bf16.msra.mxu0 %v738
        %983 = vmatprep.subr.bf16.mxu0 %v737
        %984 = vmatpush1.bf16.msra.mxu0 %v736
        %985 = vmatprep.subr.bf16.mxu0 %v735
        %986 = vmatpush1.bf16.msra.mxu0 %v734
        %987 = vmatprep.subr.bf16.mxu0 %v733
        %988 = vmatpush1.bf16.msra.mxu0 %v732
        %989 = vmatprep.subr.bf16.mxu0 %v731
        %990 = vmatpush1.bf16.msra.mxu0 %v730
        %991 = vmatprep.subr.bf16.mxu0 %v729
        %992 = vmatpush1.bf16.msra.mxu0 %v728
        %993 = vmatprep.subr.bf16.mxu0 %v727
        %994 = vmatpush1.bf16.msra.mxu0 %v726
        %995 = vmatprep.subr.bf16.mxu0 %v725
        %996 = vmatpush1.bf16.msra.mxu0 %v724
        %997 = vmatprep.subr.bf16.mxu0 0
        %998 = vmatpush2.bf16.msra.mxu0 0
        %999 = vmatprep.subr.bf16.mxu0 0
        %1000 = vmatpush2.bf16.msra.mxu0 0
        %1001 = vmatprep.subr.bf16.mxu0 0
        %1002 = vmatpush2.bf16.msra.mxu0 0
        %1003 = vmatprep.subr.bf16.mxu0 0
        %1004 = vmatpush2.bf16.msra.mxu0 0
        %1005 = vmatprep.subr.bf16.mxu0 0
        %1006 = vmatpush2.bf16.msra.mxu0 0
        %1007 = vmatprep.subr.bf16.mxu0 0
        %1008 = vmatpush2.bf16.msra.mxu0 0
        %1009 = vmatprep.subr.bf16.mxu0 0
        %1010 = vmatpush2.bf16.msra.mxu0 0
        %1011 = vmatprep.subr.bf16.mxu0 0
        %1012 = vmatpush2.bf16.msra.mxu0 0
        %1013 = vmatprep.mubr.bf16.mxu0 0
        %1014 = vmatmul.mubr.bf16.gmra.mxu0 %v454
        %v1015 = vpop.f32.mrf.mxu0
        %v1016 = vadd.f32 %v823, %v1015
        %v1017 = vpop.f32.mrf.mxu0
        %v1018 = vadd.f32 %v825, %v1017
        %v1019 = vpop.f32.mrf.mxu0
        %v1020 = vadd.f32 %v827, %v1019
        %v1021 = vpop.f32.mrf.mxu0
        %v1022 = vadd.f32 %v829, %v1021
        %1023 = vmatprep.mubr.bf16.mxu0 0
        %1024 = vmatmul.mubr.bf16.gmra.mxu0 %v457
        %v1025 = vpop.f32.mrf.mxu0
        %v1026 = vadd.f32 %v833, %v1025
        %v1027 = vpop.f32.mrf.mxu0
        %v1028 = vadd.f32 %v835, %v1027
        %v1029 = vpop.f32.mrf.mxu0
        %v1030 = vadd.f32 %v837, %v1029
        %v1031 = vpop.f32.mrf.mxu0
        %v1032 = vadd.f32 %v839, %v1031
        %1033 = vmatprep.mubr.bf16.mxu0 0
        %1034 = vmatmul.mubr.bf16.gmra.mxu0 %v460
        %v1035 = vpop.f32.mrf.mxu0
        %v1036 = vadd.f32 %v843, %v1035
        %v1037 = vpop.f32.mrf.mxu0
        %v1038 = vadd.f32 %v845, %v1037
        %v1039 = vpop.f32.mrf.mxu0
        %v1040 = vadd.f32 %v847, %v1039
        %v1041 = vpop.f32.mrf.mxu0
        %v1042 = vadd.f32 %v849, %v1041
        %1043 = vmatprep.mubr.bf16.mxu0 0
        %1044 = vmatmul.mubr.bf16.gmra.mxu0 %v463
        %v1045 = vpop.f32.mrf.mxu0
        %v1046 = vadd.f32 %v853, %v1045
        %v1047 = vpop.f32.mrf.mxu0
        %v1048 = vadd.f32 %v855, %v1047
        %v1049 = vpop.f32.mrf.mxu0
        %v1050 = vadd.f32 %v857, %v1049
        %v1051 = vpop.f32.mrf.mxu0
        %v1052 = vadd.f32 %v859, %v1051
        %1053 = vmatprep.mubr.bf16.mxu0 0
        %1054 = vmatmul.mubr.bf16.gmra.mxu0 %v466
        %v1055 = vpop.f32.mrf.mxu0
        %v1056 = vadd.f32 %v863, %v1055
        %v1057 = vpop.f32.mrf.mxu0
        %v1058 = vadd.f32 %v865, %v1057
        %v1059 = vpop.f32.mrf.mxu0
        %v1060 = vadd.f32 %v867, %v1059
        %v1061 = vpop.f32.mrf.mxu0
        %v1062 = vadd.f32 %v869, %v1061
        %1063 = vmatprep.mubr.bf16.mxu0 0
        %1064 = vmatmul.mubr.bf16.gmra.mxu0 %v469
        %v1065 = vpop.f32.mrf.mxu0
        %v1066 = vadd.f32 %v873, %v1065
        %v1067 = vpop.f32.mrf.mxu0
        %v1068 = vadd.f32 %v875, %v1067
        %v1069 = vpop.f32.mrf.mxu0
        %v1070 = vadd.f32 %v877, %v1069
        %v1071 = vpop.f32.mrf.mxu0
        %v1072 = vadd.f32 %v879, %v1071
        %1073 = vmatprep.mubr.bf16.mxu0 0
        %1074 = vmatmul.mubr.bf16.gmra.mxu0 %v472
        %v1075 = vpop.f32.mrf.mxu0
        %v1076 = vadd.f32 %v883, %v1075
        %v1077 = vpop.f32.mrf.mxu0
        %v1078 = vadd.f32 %v885, %v1077
        %v1079 = vpop.f32.mrf.mxu0
        %v1080 = vadd.f32 %v887, %v1079
        %v1081 = vpop.f32.mrf.mxu0
        %v1082 = vadd.f32 %v889, %v1081
        %1083 = vmatprep.mubr.bf16.mxu0 0
        %1084 = vmatmul.mubr.bf16.gmra.mxu0 %v475
        %v1085 = vpop.f32.mrf.mxu0
        %v1086 = vadd.f32 %v893, %v1085
        %v1087 = vpop.f32.mrf.mxu0
        %v1088 = vadd.f32 %v895, %v1087
        %v1089 = vpop.f32.mrf.mxu0
        %v1090 = vadd.f32 %v897, %v1089
        %v1091 = vpop.f32.mrf.mxu0
        %v1092 = vadd.f32 %v899, %v1091
        %1093 = vmatprep.mubr.bf16.mxu0 0
        %1094 = vmatmul.mubr.bf16.gmra.mxu0 %v478
        %v1095 = vpop.f32.mrf.mxu0
        %v1096 = vadd.f32 %v903, %v1095
        %v1097 = vpop.f32.mrf.mxu0
        %v1098 = vadd.f32 %v905, %v1097
        %v1099 = vpop.f32.mrf.mxu0
        %v1100 = vadd.f32 %v907, %v1099
        %v1101 = vpop.f32.mrf.mxu0
        %v1102 = vadd.f32 %v909, %v1101
        %1103 = vmatprep.mubr.bf16.mxu0 0
        %1104 = vmatmul.mubr.bf16.gmra.mxu0 %v481
        %v1105 = vpop.f32.mrf.mxu0
        %v1106 = vadd.f32 %v913, %v1105
        %v1107 = vpop.f32.mrf.mxu0
        %v1108 = vadd.f32 %v915, %v1107
        %v1109 = vpop.f32.mrf.mxu0
        %v1110 = vadd.f32 %v917, %v1109
        %v1111 = vpop.f32.mrf.mxu0
        %v1112 = vadd.f32 %v919, %v1111
        %1113 = vmatprep.mubr.bf16.mxu0 0
        %1114 = vmatmul.mubr.bf16.gmra.mxu0 %v484
        %v1115 = vpop.f32.mrf.mxu0
        %v1116 = vadd.f32 %v923, %v1115
        %v1117 = vpop.f32.mrf.mxu0
        %v1118 = vadd.f32 %v925, %v1117
        %v1119 = vpop.f32.mrf.mxu0
        %v1120 = vadd.f32 %v927, %v1119
        %v1121 = vpop.f32.mrf.mxu0
        %v1122 = vadd.f32 %v929, %v1121
        %1123 = vmatprep.mubr.bf16.mxu0 0
        %1124 = vmatmul.mubr.bf16.gmra.mxu0 %v487
        %v1125 = vpop.f32.mrf.mxu0
        %v1126 = vadd.f32 %v933, %v1125
        %v1127 = vpop.f32.mrf.mxu0
        %v1128 = vadd.f32 %v935, %v1127
        %v1129 = vpop.f32.mrf.mxu0
        %v1130 = vadd.f32 %v937, %v1129
        %v1131 = vpop.f32.mrf.mxu0
        %v1132 = vadd.f32 %v939, %v1131
        %1133 = vmatprep.mubr.bf16.mxu0 0
        %1134 = vmatmul.mubr.bf16.gmra.mxu0 %v490
        %v1135 = vpop.f32.mrf.mxu0
        %v1136 = vadd.f32 %v943, %v1135
        %v1137 = vpop.f32.mrf.mxu0
        %v1138 = vadd.f32 %v945, %v1137
        %v1139 = vpop.f32.mrf.mxu0
        %v1140 = vadd.f32 %v947, %v1139
        %v1141 = vpop.f32.mrf.mxu0
        %v1142 = vadd.f32 %v949, %v1141
        %1143 = vmatprep.mubr.bf16.mxu0 0
        %1144 = vmatmul.mubr.bf16.gmra.mxu0 %v493
        %v1145 = vpop.f32.mrf.mxu0
        %v1146 = vadd.f32 %v953, %v1145
        %v1147 = vpop.f32.mrf.mxu0
        %v1148 = vadd.f32 %v955, %v1147
        %v1149 = vpop.f32.mrf.mxu0
        %v1150 = vadd.f32 %v957, %v1149
        %v1151 = vpop.f32.mrf.mxu0
        %v1152 = vadd.f32 %v959, %v1151
        %1153 = vmatprep.mubr.bf16.mxu0 0
        %1154 = vmatmul.mubr.bf16.gmra.mxu0 %v496
        %v1155 = vpop.f32.mrf.mxu0
        %v1156 = vadd.f32 %v963, %v1155
        %v1157 = vpop.f32.mrf.mxu0
        %v1158 = vadd.f32 %v965, %v1157
        %v1159 = vpop.f32.mrf.mxu0
        %v1160 = vadd.f32 %v967, %v1159
        %v1161 = vpop.f32.mrf.mxu0
        %v1162 = vadd.f32 %v969, %v1161
        %1163 = vmatprep.mubr.bf16.mxu0 0
        %1164 = vmatmul.mubr.bf16.gmra.mxu0 %v499
        %v1165 = vpop.f32.mrf.mxu0
        %v1166 = vadd.f32 %v973, %v1165
        %v1167 = vpop.f32.mrf.mxu0
        %v1168 = vadd.f32 %v975, %v1167
        %v1169 = vpop.f32.mrf.mxu0
        %v1170 = vadd.f32 %v977, %v1169
        %v1171 = vpop.f32.mrf.mxu0
        %v1172 = vadd.f32 %v979, %v1171
        %1173 = vdwg.mxu0
        %v1174 = vpack.c.bf16 %v1020, %v1016
        %v1175 = vpack.c.bf16 %v1030, %v1026
        %v1176 = vpack.c.bf16 %v1040, %v1036
        %v1177 = vpack.c.bf16 %v1050, %v1046
        %v1178 = vpack.c.bf16 %v1060, %v1056
        %v1179 = vpack.c.bf16 %v1070, %v1066
        %v1180 = vpack.c.bf16 %v1080, %v1076
        %v1181 = vpack.c.bf16 %v1090, %v1086
        %v1182 = vpack.c.bf16 %v1100, %v1096
        %v1183 = vpack.c.bf16 %v1110, %v1106
        %v1184 = vpack.c.bf16 %v1120, %v1116
        %v1185 = vpack.c.bf16 %v1130, %v1126
        %v1186 = vpack.c.bf16 %v1140, %v1136
        %v1187 = vpack.c.bf16 %v1150, %v1146
        %v1188 = vpack.c.bf16 %v1160, %v1156
        %v1189 = vpack.c.bf16 %v1170, %v1166
        %v1190 = vpack.c.bf16 %v1022, %v1018
        %v1191 = vpack.c.bf16 %v1032, %v1028
        %v1192 = vpack.c.bf16 %v1042, %v1038
        %v1193 = vpack.c.bf16 %v1052, %v1048
        %v1194 = vpack.c.bf16 %v1062, %v1058
        %v1195 = vpack.c.bf16 %v1072, %v1068
        %v1196 = vpack.c.bf16 %v1082, %v1078
        %v1197 = vpack.c.bf16 %v1092, %v1088
        %v1198 = vpack.c.bf16 %v1102, %v1098
        %v1199 = vpack.c.bf16 %v1112, %v1108
        %v1200 = vpack.c.bf16 %v1122, %v1118
        %v1201 = vpack.c.bf16 %v1132, %v1128
        %v1202 = vpack.c.bf16 %v1142, %v1138
        %v1203 = vpack.c.bf16 %v1152, %v1148
        %v1204 = vpack.c.bf16 %v1162, %v1158
        %v1205 = vpack.c.bf16 %v1172, %v1168
        %1206 = vmatprep.subr.bf16.mxu0 0
        %1207 = vmatpush1.bf16.xpose.msra.mxu0 %v1197
        %1208 = vmatprep.subr.bf16.mxu0 0
        %1209 = vmatpush1.bf16.xpose.msra.mxu0 %v1196
        %1210 = vmatprep.subr.bf16.mxu0 0
        %1211 = vmatpush1.bf16.xpose.msra.mxu0 %v1195
        %1212 = vmatprep.subr.bf16.mxu0 0
        %1213 = vmatpush1.bf16.xpose.msra.mxu0 %v1194
        %1214 = vmatprep.subr.bf16.mxu0 0
        %1215 = vmatpush1.bf16.xpose.msra.mxu0 %v1193
        %1216 = vmatprep.subr.bf16.mxu0 0
        %1217 = vmatpush1.bf16.xpose.msra.mxu0 %v1192
        %1218 = vmatprep.subr.bf16.mxu0 0
        %1219 = vmatpush1.bf16.xpose.msra.mxu0 %v1191
        %1220 = vmatprep.subr.bf16.mxu0 0
        %1221 = vmatpush1.bf16.xpose.msra.mxu0 %v1190
        %1222 = vmatprep.subr.bf16.mxu0 0
        %1223 = vmatpush2.bf16.xpose.msra.mxu0 %v1205
        %1224 = vmatprep.subr.bf16.mxu0 0
        %1225 = vmatpush2.bf16.xpose.msra.mxu0 %v1204
        %1226 = vmatprep.subr.bf16.mxu0 0
        %1227 = vmatpush2.bf16.xpose.msra.mxu0 %v1203
        %1228 = vmatprep.subr.bf16.mxu0 0
        %1229 = vmatpush2.bf16.xpose.msra.mxu0 %v1202
        %1230 = vmatprep.subr.bf16.mxu0 0
        %1231 = vmatpush2.bf16.xpose.msra.mxu0 %v1201
        %1232 = vmatprep.subr.bf16.mxu0 0
        %1233 = vmatpush2.bf16.xpose.msra.mxu0 %v1200
        %1234 = vmatprep.subr.bf16.mxu0 0
        %1235 = vmatpush2.bf16.xpose.msra.mxu0 %v1199
        %1236 = vmatprep.subr.bf16.mxu0 0
        %1237 = vmatpush2.bf16.xpose.msra.mxu0 %v1198
        %1238 = vmatprep.mubr.bf16.mxu0 0
        %1239 = vmatmul.mubr.bf16.gmra.mxu0 %v1174
        %v1240 = vpop.f32.mrf.mxu0
        %v1241 = vadd.f32 0.0, %v1240
        %v1242 = vpop.f32.mrf.mxu0
        %v1243 = vadd.f32 0.0, %v1242
        %v1244 = vpop.f32.mrf.mxu0
        %v1245 = vadd.f32 0.0, %v1244
        %v1246 = vpop.f32.mrf.mxu0
        %v1247 = vadd.f32 0.0, %v1246
        %1248 = vmatprep.mubr.bf16.mxu0 0
        %1249 = vmatmul.mubr.bf16.gmra.mxu0 %v1175
        %v1250 = vpop.f32.mrf.mxu0
        %v1251 = vadd.f32 0.0, %v1250
        %v1252 = vpop.f32.mrf.mxu0
        %v1253 = vadd.f32 0.0, %v1252
        %v1254 = vpop.f32.mrf.mxu0
        %v1255 = vadd.f32 0.0, %v1254
        %v1256 = vpop.f32.mrf.mxu0
        %v1257 = vadd.f32 0.0, %v1256
        %1258 = vmatprep.mubr.bf16.mxu0 0
        %1259 = vmatmul.mubr.bf16.gmra.mxu0 %v1176
        %v1260 = vpop.f32.mrf.mxu0
        %v1261 = vadd.f32 0.0, %v1260
        %v1262 = vpop.f32.mrf.mxu0
        %v1263 = vadd.f32 0.0, %v1262
        %v1264 = vpop.f32.mrf.mxu0
        %v1265 = vadd.f32 0.0, %v1264
        %v1266 = vpop.f32.mrf.mxu0
        %v1267 = vadd.f32 0.0, %v1266
        %1268 = vmatprep.mubr.bf16.mxu0 0
        %1269 = vmatmul.mubr.bf16.gmra.mxu0 %v1177
        %v1270 = vpop.f32.mrf.mxu0
        %v1271 = vadd.f32 0.0, %v1270
        %v1272 = vpop.f32.mrf.mxu0
        %v1273 = vadd.f32 0.0, %v1272
        %v1274 = vpop.f32.mrf.mxu0
        %v1275 = vadd.f32 0.0, %v1274
        %v1276 = vpop.f32.mrf.mxu0
        %v1277 = vadd.f32 0.0, %v1276
        %1278 = vmatprep.mubr.bf16.mxu0 0
        %1279 = vmatmul.mubr.bf16.gmra.mxu0 %v1178
        %v1280 = vpop.f32.mrf.mxu0
        %v1281 = vadd.f32 0.0, %v1280
        %v1282 = vpop.f32.mrf.mxu0
        %v1283 = vadd.f32 0.0, %v1282
        %v1284 = vpop.f32.mrf.mxu0
        %v1285 = vadd.f32 0.0, %v1284
        %v1286 = vpop.f32.mrf.mxu0
        %v1287 = vadd.f32 0.0, %v1286
        %1288 = vmatprep.mubr.bf16.mxu0 0
        %1289 = vmatmul.mubr.bf16.gmra.mxu0 %v1179
        %v1290 = vpop.f32.mrf.mxu0
        %v1291 = vadd.f32 0.0, %v1290
        %v1292 = vpop.f32.mrf.mxu0
        %v1293 = vadd.f32 0.0, %v1292
        %v1294 = vpop.f32.mrf.mxu0
        %v1295 = vadd.f32 0.0, %v1294
        %v1296 = vpop.f32.mrf.mxu0
        %v1297 = vadd.f32 0.0, %v1296
        %1298 = vmatprep.mubr.bf16.mxu0 0
        %1299 = vmatmul.mubr.bf16.gmra.mxu0 %v1180
        %v1300 = vpop.f32.mrf.mxu0
        %v1301 = vadd.f32 0.0, %v1300
        %v1302 = vpop.f32.mrf.mxu0
        %v1303 = vadd.f32 0.0, %v1302
        %v1304 = vpop.f32.mrf.mxu0
        %v1305 = vadd.f32 0.0, %v1304
        %v1306 = vpop.f32.mrf.mxu0
        %v1307 = vadd.f32 0.0, %v1306
        %1308 = vmatprep.mubr.bf16.mxu0 0
        %1309 = vmatmul.mubr.bf16.gmra.mxu0 %v1181
        %v1310 = vpop.f32.mrf.mxu0
        %v1311 = vadd.f32 0.0, %v1310
        %v1312 = vpop.f32.mrf.mxu0
        %v1313 = vadd.f32 0.0, %v1312
        %v1314 = vpop.f32.mrf.mxu0
        %v1315 = vadd.f32 0.0, %v1314
        %v1316 = vpop.f32.mrf.mxu0
        %v1317 = vadd.f32 0.0, %v1316
        %1318 = vmatprep.mubr.bf16.mxu0 0
        %1319 = vmatmul.mubr.bf16.gmra.mxu0 %v1182
        %v1320 = vpop.f32.mrf.mxu0
        %v1321 = vadd.f32 0.0, %v1320
        %v1322 = vpop.f32.mrf.mxu0
        %v1323 = vadd.f32 0.0, %v1322
        %v1324 = vpop.f32.mrf.mxu0
        %v1325 = vadd.f32 0.0, %v1324
        %v1326 = vpop.f32.mrf.mxu0
        %v1327 = vadd.f32 0.0, %v1326
        %1328 = vmatprep.mubr.bf16.mxu0 0
        %1329 = vmatmul.mubr.bf16.gmra.mxu0 %v1183
        %v1330 = vpop.f32.mrf.mxu0
        %v1331 = vadd.f32 0.0, %v1330
        %v1332 = vpop.f32.mrf.mxu0
        %v1333 = vadd.f32 0.0, %v1332
        %v1334 = vpop.f32.mrf.mxu0
        %v1335 = vadd.f32 0.0, %v1334
        %v1336 = vpop.f32.mrf.mxu0
        %v1337 = vadd.f32 0.0, %v1336
        %1338 = vmatprep.mubr.bf16.mxu0 0
        %1339 = vmatmul.mubr.bf16.gmra.mxu0 %v1184
        %v1340 = vpop.f32.mrf.mxu0
        %v1341 = vadd.f32 0.0, %v1340
        %v1342 = vpop.f32.mrf.mxu0
        %v1343 = vadd.f32 0.0, %v1342
        %v1344 = vpop.f32.mrf.mxu0
        %v1345 = vadd.f32 0.0, %v1344
        %v1346 = vpop.f32.mrf.mxu0
        %v1347 = vadd.f32 0.0, %v1346
        %1348 = vmatprep.mubr.bf16.mxu0 0
        %1349 = vmatmul.mubr.bf16.gmra.mxu0 %v1185
        %v1350 = vpop.f32.mrf.mxu0
        %v1351 = vadd.f32 0.0, %v1350
        %v1352 = vpop.f32.mrf.mxu0
        %v1353 = vadd.f32 0.0, %v1352
        %v1354 = vpop.f32.mrf.mxu0
        %v1355 = vadd.f32 0.0, %v1354
        %v1356 = vpop.f32.mrf.mxu0
        %v1357 = vadd.f32 0.0, %v1356
        %1358 = vmatprep.mubr.bf16.mxu0 0
        %1359 = vmatmul.mubr.bf16.gmra.mxu0 %v1186
        %v1360 = vpop.f32.mrf.mxu0
        %v1361 = vadd.f32 0.0, %v1360
        %v1362 = vpop.f32.mrf.mxu0
        %v1363 = vadd.f32 0.0, %v1362
        %v1364 = vpop.f32.mrf.mxu0
        %v1365 = vadd.f32 0.0, %v1364
        %v1366 = vpop.f32.mrf.mxu0
        %v1367 = vadd.f32 0.0, %v1366
        %1368 = vmatprep.mubr.bf16.mxu0 0
        %1369 = vmatmul.mubr.bf16.gmra.mxu0 %v1187
        %v1370 = vpop.f32.mrf.mxu0
        %v1371 = vadd.f32 0.0, %v1370
        %v1372 = vpop.f32.mrf.mxu0
        %v1373 = vadd.f32 0.0, %v1372
        %v1374 = vpop.f32.mrf.mxu0
        %v1375 = vadd.f32 0.0, %v1374
        %v1376 = vpop.f32.mrf.mxu0
        %v1377 = vadd.f32 0.0, %v1376
        %1378 = vmatprep.mubr.bf16.mxu0 0
        %1379 = vmatmul.mubr.bf16.gmra.mxu0 %v1188
        %v1380 = vpop.f32.mrf.mxu0
        %v1381 = vadd.f32 0.0, %v1380
        %v1382 = vpop.f32.mrf.mxu0
        %v1383 = vadd.f32 0.0, %v1382
        %v1384 = vpop.f32.mrf.mxu0
        %v1385 = vadd.f32 0.0, %v1384
        %v1386 = vpop.f32.mrf.mxu0
        %v1387 = vadd.f32 0.0, %v1386
        %1388 = vmatprep.mubr.bf16.mxu0 0
        %1389 = vmatmul.mubr.bf16.gmra.mxu0 %v1189
        %v1390 = vpop.f32.mrf.mxu0
        %v1391 = vadd.f32 0.0, %v1390
        %v1392 = vpop.f32.mrf.mxu0
        %v1393 = vadd.f32 0.0, %v1392
        %v1394 = vpop.f32.mrf.mxu0
        %v1395 = vadd.f32 0.0, %v1394
        %v1396 = vpop.f32.mrf.mxu0
        %v1397 = vadd.f32 0.0, %v1396
        %1398 = vdwg.mxu0
        %v1399 = vlaneseq
        %v1400 = vshrl.u32 %v1399, 7
        %v1401 = vadd.s32 %v1400, 8
        %v1402 = vadd.s32 %v1400, 16
        %v1403 = vadd.s32 %v1400, 24
        %v1404 = vadd.s32 %v1400, 32
        %v1405 = vadd.s32 %v1400, 40
        %v1406 = vadd.s32 %v1400, 48
        %v1407 = vadd.s32 %v1400, 56
        %v1408 = vadd.s32 %v1400, 64
        %v1409 = vadd.s32 %v1400, 72
        %v1410 = vadd.s32 %v1400, 80
        %v1411 = vadd.s32 %v1400, 88
        %v1412 = vadd.s32 %v1400, 96
        %v1413 = vadd.s32 %v1400, 104
        %v1414 = vadd.s32 %v1400, 112
        %v1415 = vadd.s32 %v1400, 120
        %v1416 = vadd.s32 %v1400, 128
        %v1417 = vadd.s32 %v1400, 136
        %v1418 = vadd.s32 %v1400, 144
        %v1419 = vadd.s32 %v1400, 152
        %v1420 = vadd.s32 %v1400, 160
        %v1421 = vadd.s32 %v1400, 168
        %v1422 = vadd.s32 %v1400, 176
        %v1423 = vadd.s32 %v1400, 184
        %v1424 = vadd.s32 %v1400, 192
        %v1425 = vadd.s32 %v1400, 200
        %v1426 = vadd.s32 %v1400, 208
        %v1427 = vadd.s32 %v1400, 216
        %v1428 = vadd.s32 %v1400, 224
        %v1429 = vadd.s32 %v1400, 232
        %v1430 = vadd.s32 %v1400, 240
        %v1431 = vadd.s32 %v1400, 248
        %v1432 = vlaneseq
        %v1433 = vand.u32 %v1432, 127
        %v1434 = vadd.s32 %v1433, 128
        %vm1435 = vcmp.le.s32.totalorder %v1433, %v1400
        %vm1436 = vcmp.le.s32.totalorder %v1434, %v1400
        %vm1437 = vcmp.le.s32.totalorder %v1433, %v1401
        %vm1438 = vcmp.le.s32.totalorder %v1434, %v1401
        %vm1439 = vcmp.le.s32.totalorder %v1433, %v1402
        %vm1440 = vcmp.le.s32.totalorder %v1434, %v1402
        %vm1441 = vcmp.le.s32.totalorder %v1433, %v1403
        %vm1442 = vcmp.le.s32.totalorder %v1434, %v1403
        %vm1443 = vcmp.le.s32.totalorder %v1433, %v1404
        %vm1444 = vcmp.le.s32.totalorder %v1434, %v1404
        %vm1445 = vcmp.le.s32.totalorder %v1433, %v1405
        %vm1446 = vcmp.le.s32.totalorder %v1434, %v1405
        %vm1447 = vcmp.le.s32.totalorder %v1433, %v1406
        %vm1448 = vcmp.le.s32.totalorder %v1434, %v1406
        %vm1449 = vcmp.le.s32.totalorder %v1433, %v1407
        %vm1450 = vcmp.le.s32.totalorder %v1434, %v1407
        %vm1451 = vcmp.le.s32.totalorder %v1433, %v1408
        %vm1452 = vcmp.le.s32.totalorder %v1434, %v1408
        %vm1453 = vcmp.le.s32.totalorder %v1433, %v1409
        %vm1454 = vcmp.le.s32.totalorder %v1434, %v1409
        %vm1455 = vcmp.le.s32.totalorder %v1433, %v1410
        %vm1456 = vcmp.le.s32.totalorder %v1434, %v1410
        %vm1457 = vcmp.le.s32.totalorder %v1433, %v1411
        %vm1458 = vcmp.le.s32.totalorder %v1434, %v1411
        %vm1459 = vcmp.le.s32.totalorder %v1433, %v1412
        %vm1460 = vcmp.le.s32.totalorder %v1434, %v1412
        %vm1461 = vcmp.le.s32.totalorder %v1433, %v1413
        %vm1462 = vcmp.le.s32.totalorder %v1434, %v1413
        %vm1463 = vcmp.le.s32.totalorder %v1433, %v1414
        %vm1464 = vcmp.le.s32.totalorder %v1434, %v1414
        %vm1465 = vcmp.le.s32.totalorder %v1433, %v1415
        %vm1466 = vcmp.le.s32.totalorder %v1434, %v1415
        %vm1467 = vcmp.le.s32.totalorder %v1433, %v1416
        %vm1468 = vcmp.le.s32.totalorder %v1434, %v1416
        %vm1469 = vcmp.le.s32.totalorder %v1433, %v1417
        %vm1470 = vcmp.le.s32.totalorder %v1434, %v1417
        %vm1471 = vcmp.le.s32.totalorder %v1433, %v1418
        %vm1472 = vcmp.le.s32.totalorder %v1434, %v1418
        %vm1473 = vcmp.le.s32.totalorder %v1433, %v1419
        %vm1474 = vcmp.le.s32.totalorder %v1434, %v1419
        %vm1475 = vcmp.le.s32.totalorder %v1433, %v1420
        %vm1476 = vcmp.le.s32.totalorder %v1434, %v1420
        %vm1477 = vcmp.le.s32.totalorder %v1433, %v1421
        %vm1478 = vcmp.le.s32.totalorder %v1434, %v1421
        %vm1479 = vcmp.le.s32.totalorder %v1433, %v1422
        %vm1480 = vcmp.le.s32.totalorder %v1434, %v1422
        %vm1481 = vcmp.le.s32.totalorder %v1433, %v1423
        %vm1482 = vcmp.le.s32.totalorder %v1434, %v1423
        %vm1483 = vcmp.le.s32.totalorder %v1433, %v1424
        %vm1484 = vcmp.le.s32.totalorder %v1434, %v1424
        %vm1485 = vcmp.le.s32.totalorder %v1433, %v1425
        %vm1486 = vcmp.le.s32.totalorder %v1434, %v1425
        %vm1487 = vcmp.le.s32.totalorder %v1433, %v1426
        %vm1488 = vcmp.le.s32.totalorder %v1434, %v1426
        %vm1489 = vcmp.le.s32.totalorder %v1433, %v1427
        %vm1490 = vcmp.le.s32.totalorder %v1434, %v1427
        %vm1491 = vcmp.le.s32.totalorder %v1433, %v1428
        %vm1492 = vcmp.le.s32.totalorder %v1434, %v1428
        %vm1493 = vcmp.le.s32.totalorder %v1433, %v1429
        %vm1494 = vcmp.le.s32.totalorder %v1434, %v1429
        %vm1495 = vcmp.le.s32.totalorder %v1433, %v1430
        %vm1496 = vcmp.le.s32.totalorder %v1434, %v1430
        %vm1497 = vcmp.le.s32.totalorder %v1433, %v1431
        %vm1498 = vcmp.le.s32.totalorder %v1434, %v1431
        %v1499 = vsel %vm1435, %v1241, -1e+30
        %v1500 = vsel %vm1436, %v1243, -1e+30
        %v1501 = vsel %vm1437, %v1245, -1e+30
        %v1502 = vsel %vm1438, %v1247, -1e+30
        %v1503 = vsel %vm1439, %v1251, -1e+30
        %v1504 = vsel %vm1440, %v1253, -1e+30
        %v1505 = vsel %vm1441, %v1255, -1e+30
        %v1506 = vsel %vm1442, %v1257, -1e+30
        %v1507 = vsel %vm1443, %v1261, -1e+30
        %v1508 = vsel %vm1444, %v1263, -1e+30
        %v1509 = vsel %vm1445, %v1265, -1e+30
        %v1510 = vsel %vm1446, %v1267, -1e+30
        %v1511 = vsel %vm1447, %v1271, -1e+30
        %v1512 = vsel %vm1448, %v1273, -1e+30
        %v1513 = vsel %vm1449, %v1275, -1e+30
        %v1514 = vsel %vm1450, %v1277, -1e+30
        %v1515 = vsel %vm1451, %v1281, -1e+30
        %v1516 = vsel %vm1452, %v1283, -1e+30
        %v1517 = vsel %vm1453, %v1285, -1e+30
        %v1518 = vsel %vm1454, %v1287, -1e+30
        %v1519 = vsel %vm1455, %v1291, -1e+30
        %v1520 = vsel %vm1456, %v1293, -1e+30
        %v1521 = vsel %vm1457, %v1295, -1e+30
        %v1522 = vsel %vm1458, %v1297, -1e+30
        %v1523 = vsel %vm1459, %v1301, -1e+30
        %v1524 = vsel %vm1460, %v1303, -1e+30
        %v1525 = vsel %vm1461, %v1305, -1e+30
        %v1526 = vsel %vm1462, %v1307, -1e+30
        %v1527 = vsel %vm1463, %v1311, -1e+30
        %v1528 = vsel %vm1464, %v1313, -1e+30
        %v1529 = vsel %vm1465, %v1315, -1e+30
        %v1530 = vsel %vm1466, %v1317, -1e+30
        %v1531 = vsel %vm1467, %v1321, -1e+30
        %v1532 = vsel %vm1468, %v1323, -1e+30
        %v1533 = vsel %vm1469, %v1325, -1e+30
        %v1534 = vsel %vm1470, %v1327, -1e+30
        %v1535 = vsel %vm1471, %v1331, -1e+30
        %v1536 = vsel %vm1472, %v1333, -1e+30
        %v1537 = vsel %vm1473, %v1335, -1e+30
        %v1538 = vsel %vm1474, %v1337, -1e+30
        %v1539 = vsel %vm1475, %v1341, -1e+30
        %v1540 = vsel %vm1476, %v1343, -1e+30
        %v1541 = vsel %vm1477, %v1345, -1e+30
        %v1542 = vsel %vm1478, %v1347, -1e+30
        %v1543 = vsel %vm1479, %v1351, -1e+30
        %v1544 = vsel %vm1480, %v1353, -1e+30
        %v1545 = vsel %vm1481, %v1355, -1e+30
        %v1546 = vsel %vm1482, %v1357, -1e+30
        %v1547 = vsel %vm1483, %v1361, -1e+30
        %v1548 = vsel %vm1484, %v1363, -1e+30
        %v1549 = vsel %vm1485, %v1365, -1e+30
        %v1550 = vsel %vm1486, %v1367, -1e+30
        %v1551 = vsel %vm1487, %v1371, -1e+30
        %v1552 = vsel %vm1488, %v1373, -1e+30
        %v1553 = vsel %vm1489, %v1375, -1e+30
        %v1554 = vsel %vm1490, %v1377, -1e+30
        %v1555 = vsel %vm1491, %v1381, -1e+30
        %v1556 = vsel %vm1492, %v1383, -1e+30
        %v1557 = vsel %vm1493, %v1385, -1e+30
        %v1558 = vsel %vm1494, %v1387, -1e+30
        %v1559 = vsel %vm1495, %v1391, -1e+30
        %v1560 = vsel %vm1496, %v1393, -1e+30
        %v1561 = vsel %vm1497, %v1395, -1e+30
        %v1562 = vsel %vm1498, %v1397, -1e+30
        %v1563 = vmax.f32 %v1499, %v1500
        %1564 = vmax.xlane.f32.xlu0 %v1563
        %v1565 = vpop.xlane.xlu0 %1564
        %v1566 = vmax.f32 %v1501, %v1502
        %1567 = vmax.xlane.f32.xlu0 %v1566
        %v1568 = vpop.xlane.xlu0 %1567
        %v1569 = vmax.f32 %v1503, %v1504
        %1570 = vmax.xlane.f32.xlu0 %v1569
        %v1571 = vpop.xlane.xlu0 %1570
        %v1572 = vmax.f32 %v1505, %v1506
        %1573 = vmax.xlane.f32.xlu0 %v1572
        %v1574 = vpop.xlane.xlu0 %1573
        %v1575 = vmax.f32 %v1507, %v1508
        %1576 = vmax.xlane.f32.xlu0 %v1575
        %v1577 = vpop.xlane.xlu0 %1576
        %v1578 = vmax.f32 %v1509, %v1510
        %1579 = vmax.xlane.f32.xlu0 %v1578
        %v1580 = vpop.xlane.xlu0 %1579
        %v1581 = vmax.f32 %v1511, %v1512
        %1582 = vmax.xlane.f32.xlu0 %v1581
        %v1583 = vpop.xlane.xlu0 %1582
        %v1584 = vmax.f32 %v1513, %v1514
        %1585 = vmax.xlane.f32.xlu0 %v1584
        %v1586 = vpop.xlane.xlu0 %1585
        %v1587 = vmax.f32 %v1515, %v1516
        %1588 = vmax.xlane.f32.xlu0 %v1587
        %v1589 = vpop.xlane.xlu0 %1588
        %v1590 = vmax.f32 %v1517, %v1518
        %1591 = vmax.xlane.f32.xlu0 %v1590
        %v1592 = vpop.xlane.xlu0 %1591
        %v1593 = vmax.f32 %v1519, %v1520
        %1594 = vmax.xlane.f32.xlu0 %v1593
        %v1595 = vpop.xlane.xlu0 %1594
        %v1596 = vmax.f32 %v1521, %v1522
        %1597 = vmax.xlane.f32.xlu0 %v1596
        %v1598 = vpop.xlane.xlu0 %1597
        %v1599 = vmax.f32 %v1523, %v1524
        %1600 = vmax.xlane.f32.xlu0 %v1599
        %v1601 = vpop.xlane.xlu0 %1600
        %v1602 = vmax.f32 %v1525, %v1526
        %1603 = vmax.xlane.f32.xlu0 %v1602
        %v1604 = vpop.xlane.xlu0 %1603
        %v1605 = vmax.f32 %v1527, %v1528
        %1606 = vmax.xlane.f32.xlu0 %v1605
        %v1607 = vpop.xlane.xlu0 %1606
        %v1608 = vmax.f32 %v1529, %v1530
        %1609 = vmax.xlane.f32.xlu0 %v1608
        %v1610 = vpop.xlane.xlu0 %1609
        %v1611 = vmax.f32 %v1531, %v1532
        %1612 = vmax.xlane.f32.xlu0 %v1611
        %v1613 = vpop.xlane.xlu0 %1612
        %v1614 = vmax.f32 %v1533, %v1534
        %1615 = vmax.xlane.f32.xlu0 %v1614
        %v1616 = vpop.xlane.xlu0 %1615
        %v1617 = vmax.f32 %v1535, %v1536
        %1618 = vmax.xlane.f32.xlu0 %v1617
        %v1619 = vpop.xlane.xlu0 %1618
        %v1620 = vmax.f32 %v1537, %v1538
        %1621 = vmax.xlane.f32.xlu0 %v1620
        %v1622 = vpop.xlane.xlu0 %1621
        %v1623 = vmax.f32 %v1539, %v1540
        %1624 = vmax.xlane.f32.xlu0 %v1623
        %v1625 = vpop.xlane.xlu0 %1624
        %v1626 = vmax.f32 %v1541, %v1542
        %1627 = vmax.xlane.f32.xlu0 %v1626
        %v1628 = vpop.xlane.xlu0 %1627
        %v1629 = vmax.f32 %v1543, %v1544
        %1630 = vmax.xlane.f32.xlu0 %v1629
        %v1631 = vpop.xlane.xlu0 %1630
        %v1632 = vmax.f32 %v1545, %v1546
        %1633 = vmax.xlane.f32.xlu0 %v1632
        %v1634 = vpop.xlane.xlu0 %1633
        %v1635 = vmax.f32 %v1547, %v1548
        %1636 = vmax.xlane.f32.xlu0 %v1635
        %v1637 = vpop.xlane.xlu0 %1636
        %v1638 = vmax.f32 %v1549, %v1550
        %1639 = vmax.xlane.f32.xlu0 %v1638
        %v1640 = vpop.xlane.xlu0 %1639
        %v1641 = vmax.f32 %v1551, %v1552
        %1642 = vmax.xlane.f32.xlu0 %v1641
        %v1643 = vpop.xlane.xlu0 %1642
        %v1644 = vmax.f32 %v1553, %v1554
        %1645 = vmax.xlane.f32.xlu0 %v1644
        %v1646 = vpop.xlane.xlu0 %1645
        %v1647 = vmax.f32 %v1555, %v1556
        %1648 = vmax.xlane.f32.xlu0 %v1647
        %v1649 = vpop.xlane.xlu0 %1648
        %v1650 = vmax.f32 %v1557, %v1558
        %1651 = vmax.xlane.f32.xlu0 %v1650
        %v1652 = vpop.xlane.xlu0 %1651
        %v1653 = vmax.f32 %v1559, %v1560
        %1654 = vmax.xlane.f32.xlu0 %v1653
        %v1655 = vpop.xlane.xlu0 %1654
        %v1656 = vmax.f32 %v1561, %v1562
        %1657 = vmax.xlane.f32.xlu0 %v1656
        %v1658 = vpop.xlane.xlu0 %1657
        %v1659 = vsub.f32 %v1499, %v1565
        %v1660 = vsub.f32 %v1500, %v1565
        %v1661 = vsub.f32 %v1501, %v1568
        %v1662 = vsub.f32 %v1502, %v1568
        %v1663 = vsub.f32 %v1503, %v1571
        %v1664 = vsub.f32 %v1504, %v1571
        %v1665 = vsub.f32 %v1505, %v1574
        %v1666 = vsub.f32 %v1506, %v1574
        %v1667 = vsub.f32 %v1507, %v1577
        %v1668 = vsub.f32 %v1508, %v1577
        %v1669 = vsub.f32 %v1509, %v1580
        %v1670 = vsub.f32 %v1510, %v1580
        %v1671 = vsub.f32 %v1511, %v1583
        %v1672 = vsub.f32 %v1512, %v1583
        %v1673 = vsub.f32 %v1513, %v1586
        %v1674 = vsub.f32 %v1514, %v1586
        %v1675 = vsub.f32 %v1515, %v1589
        %v1676 = vsub.f32 %v1516, %v1589
        %v1677 = vsub.f32 %v1517, %v1592
        %v1678 = vsub.f32 %v1518, %v1592
        %v1679 = vsub.f32 %v1519, %v1595
        %v1680 = vsub.f32 %v1520, %v1595
        %v1681 = vsub.f32 %v1521, %v1598
        %v1682 = vsub.f32 %v1522, %v1598
        %v1683 = vsub.f32 %v1523, %v1601
        %v1684 = vsub.f32 %v1524, %v1601
        %v1685 = vsub.f32 %v1525, %v1604
        %v1686 = vsub.f32 %v1526, %v1604
        %v1687 = vsub.f32 %v1527, %v1607
        %v1688 = vsub.f32 %v1528, %v1607
        %v1689 = vsub.f32 %v1529, %v1610
        %v1690 = vsub.f32 %v1530, %v1610
        %v1691 = vsub.f32 %v1531, %v1613
        %v1692 = vsub.f32 %v1532, %v1613
        %v1693 = vsub.f32 %v1533, %v1616
        %v1694 = vsub.f32 %v1534, %v1616
        %v1695 = vsub.f32 %v1535, %v1619
        %v1696 = vsub.f32 %v1536, %v1619
        %v1697 = vsub.f32 %v1537, %v1622
        %v1698 = vsub.f32 %v1538, %v1622
        %v1699 = vsub.f32 %v1539, %v1625
        %v1700 = vsub.f32 %v1540, %v1625
        %v1701 = vsub.f32 %v1541, %v1628
        %v1702 = vsub.f32 %v1542, %v1628
        %v1703 = vsub.f32 %v1543, %v1631
        %v1704 = vsub.f32 %v1544, %v1631
        %v1705 = vsub.f32 %v1545, %v1634
        %v1706 = vsub.f32 %v1546, %v1634
        %v1707 = vsub.f32 %v1547, %v1637
        %v1708 = vsub.f32 %v1548, %v1637
        %v1709 = vsub.f32 %v1549, %v1640
        %v1710 = vsub.f32 %v1550, %v1640
        %v1711 = vsub.f32 %v1551, %v1643
        %v1712 = vsub.f32 %v1552, %v1643
        %v1713 = vsub.f32 %v1553, %v1646
        %v1714 = vsub.f32 %v1554, %v1646
        %v1715 = vsub.f32 %v1555, %v1649
        %v1716 = vsub.f32 %v1556, %v1649
        %v1717 = vsub.f32 %v1557, %v1652
        %v1718 = vsub.f32 %v1558, %v1652
        %v1719 = vsub.f32 %v1559, %v1655
        %v1720 = vsub.f32 %v1560, %v1655
        %v1721 = vsub.f32 %v1561, %v1658
        %v1722 = vsub.f32 %v1562, %v1658
        %v1723 = vmul.f32 %v1659, 1.442695
        %v1724 = vpow.pop %v1723
        %v1725 = vmul.f32 %v1660, 1.442695
        %v1726 = vpow.pop %v1725
        %v1727 = vmul.f32 %v1661, 1.442695
        %v1728 = vpow.pop %v1727
        %v1729 = vmul.f32 %v1662, 1.442695
        %v1730 = vpow.pop %v1729
        %v1731 = vmul.f32 %v1663, 1.442695
        %v1732 = vpow.pop %v1731
        %v1733 = vmul.f32 %v1664, 1.442695
        %v1734 = vpow.pop %v1733
        %v1735 = vmul.f32 %v1665, 1.442695
        %v1736 = vpow.pop %v1735
        %v1737 = vmul.f32 %v1666, 1.442695
        %v1738 = vpow.pop %v1737
        %v1739 = vmul.f32 %v1667, 1.442695
        %v1740 = vpow.pop %v1739
        %v1741 = vmul.f32 %v1668, 1.442695
        %v1742 = vpow.pop %v1741
        %v1743 = vmul.f32 %v1669, 1.442695
        %v1744 = vpow.pop %v1743
        %v1745 = vmul.f32 %v1670, 1.442695
        %v1746 = vpow.pop %v1745
        %v1747 = vmul.f32 %v1671, 1.442695
        %v1748 = vpow.pop %v1747
        %v1749 = vmul.f32 %v1672, 1.442695
        %v1750 = vpow.pop %v1749
        %v1751 = vmul.f32 %v1673, 1.442695
        %v1752 = vpow.pop %v1751
        %v1753 = vmul.f32 %v1674, 1.442695
        %v1754 = vpow.pop %v1753
        %v1755 = vmul.f32 %v1675, 1.442695
        %v1756 = vpow.pop %v1755
        %v1757 = vmul.f32 %v1676, 1.442695
        %v1758 = vpow.pop %v1757
        %v1759 = vmul.f32 %v1677, 1.442695
        %v1760 = vpow.pop %v1759
        %v1761 = vmul.f32 %v1678, 1.442695
        %v1762 = vpow.pop %v1761
        %v1763 = vmul.f32 %v1679, 1.442695
        %v1764 = vpow.pop %v1763
        %v1765 = vmul.f32 %v1680, 1.442695
        %v1766 = vpow.pop %v1765
        %v1767 = vmul.f32 %v1681, 1.442695
        %v1768 = vpow.pop %v1767
        %v1769 = vmul.f32 %v1682, 1.442695
        %v1770 = vpow.pop %v1769
        %v1771 = vmul.f32 %v1683, 1.442695
        %v1772 = vpow.pop %v1771
        %v1773 = vmul.f32 %v1684, 1.442695
        %v1774 = vpow.pop %v1773
        %v1775 = vmul.f32 %v1685, 1.442695
        %v1776 = vpow.pop %v1775
        %v1777 = vmul.f32 %v1686, 1.442695
        %v1778 = vpow.pop %v1777
        %v1779 = vmul.f32 %v1687, 1.442695
        %v1780 = vpow.pop %v1779
        %v1781 = vmul.f32 %v1688, 1.442695
        %v1782 = vpow.pop %v1781
        %v1783 = vmul.f32 %v1689, 1.442695
        %v1784 = vpow.pop %v1783
        %v1785 = vmul.f32 %v1690, 1.442695
        %v1786 = vpow.pop %v1785
        %v1787 = vmul.f32 %v1691, 1.442695
        %v1788 = vpow.pop %v1787
        %v1789 = vmul.f32 %v1692, 1.442695
        %v1790 = vpow.pop %v1789
        %v1791 = vmul.f32 %v1693, 1.442695
        %v1792 = vpow.pop %v1791
        %v1793 = vmul.f32 %v1694, 1.442695
        %v1794 = vpow.pop %v1793
        %v1795 = vmul.f32 %v1695, 1.442695
        %v1796 = vpow.pop %v1795
        %v1797 = vmul.f32 %v1696, 1.442695
        %v1798 = vpow.pop %v1797
        %v1799 = vmul.f32 %v1697, 1.442695
        %v1800 = vpow.pop %v1799
        %v1801 = vmul.f32 %v1698, 1.442695
        %v1802 = vpow.pop %v1801
        %v1803 = vmul.f32 %v1699, 1.442695
        %v1804 = vpow.pop %v1803
        %v1805 = vmul.f32 %v1700, 1.442695
        %v1806 = vpow.pop %v1805
        %v1807 = vmul.f32 %v1701, 1.442695
        %v1808 = vpow.pop %v1807
        %v1809 = vmul.f32 %v1702, 1.442695
        %v1810 = vpow.pop %v1809
        %v1811 = vmul.f32 %v1703, 1.442695
        %v1812 = vpow.pop %v1811
        %v1813 = vmul.f32 %v1704, 1.442695
        %v1814 = vpow.pop %v1813
        %v1815 = vmul.f32 %v1705, 1.442695
        %v1816 = vpow.pop %v1815
        %v1817 = vmul.f32 %v1706, 1.442695
        %v1818 = vpow.pop %v1817
        %v1819 = vmul.f32 %v1707, 1.442695
        %v1820 = vpow.pop %v1819
        %v1821 = vmul.f32 %v1708, 1.442695
        %v1822 = vpow.pop %v1821
        %v1823 = vmul.f32 %v1709, 1.442695
        %v1824 = vpow.pop %v1823
        %v1825 = vmul.f32 %v1710, 1.442695
        %v1826 = vpow.pop %v1825
        %v1827 = vmul.f32 %v1711, 1.442695
        %v1828 = vpow.pop %v1827
        %v1829 = vmul.f32 %v1712, 1.442695
        %v1830 = vpow.pop %v1829
        %v1831 = vmul.f32 %v1713, 1.442695
        %v1832 = vpow.pop %v1831
        %v1833 = vmul.f32 %v1714, 1.442695
        %v1834 = vpow.pop %v1833
        %v1835 = vmul.f32 %v1715, 1.442695
        %v1836 = vpow.pop %v1835
        %v1837 = vmul.f32 %v1716, 1.442695
        %v1838 = vpow.pop %v1837
        %v1839 = vmul.f32 %v1717, 1.442695
        %v1840 = vpow.pop %v1839
        %v1841 = vmul.f32 %v1718, 1.442695
        %v1842 = vpow.pop %v1841
        %v1843 = vmul.f32 %v1719, 1.442695
        %v1844 = vpow.pop %v1843
        %v1845 = vmul.f32 %v1720, 1.442695
        %v1846 = vpow.pop %v1845
        %v1847 = vmul.f32 %v1721, 1.442695
        %v1848 = vpow.pop %v1847
        %v1849 = vmul.f32 %v1722, 1.442695
        %v1850 = vpow.pop %v1849
        %v1851 = vadd.f32 %v1724, %v1726
        %1852 = vadd.xlane.f32.xlu0 %v1851
        %v1853 = vpop.xlane.xlu0 %1852
        %v1854 = vadd.f32 %v1728, %v1730
        %1855 = vadd.xlane.f32.xlu0 %v1854
        %v1856 = vpop.xlane.xlu0 %1855
        %v1857 = vadd.f32 %v1732, %v1734
        %1858 = vadd.xlane.f32.xlu0 %v1857
        %v1859 = vpop.xlane.xlu0 %1858
        %v1860 = vadd.f32 %v1736, %v1738
        %1861 = vadd.xlane.f32.xlu0 %v1860
        %v1862 = vpop.xlane.xlu0 %1861
        %v1863 = vadd.f32 %v1740, %v1742
        %1864 = vadd.xlane.f32.xlu0 %v1863
        %v1865 = vpop.xlane.xlu0 %1864
        %v1866 = vadd.f32 %v1744, %v1746
        %1867 = vadd.xlane.f32.xlu0 %v1866
        %v1868 = vpop.xlane.xlu0 %1867
        %v1869 = vadd.f32 %v1748, %v1750
        %1870 = vadd.xlane.f32.xlu0 %v1869
        %v1871 = vpop.xlane.xlu0 %1870
        %v1872 = vadd.f32 %v1752, %v1754
        %1873 = vadd.xlane.f32.xlu0 %v1872
        %v1874 = vpop.xlane.xlu0 %1873
        %v1875 = vadd.f32 %v1756, %v1758
        %1876 = vadd.xlane.f32.xlu0 %v1875
        %v1877 = vpop.xlane.xlu0 %1876
        %v1878 = vadd.f32 %v1760, %v1762
        %1879 = vadd.xlane.f32.xlu0 %v1878
        %v1880 = vpop.xlane.xlu0 %1879
        %v1881 = vadd.f32 %v1764, %v1766
        %1882 = vadd.xlane.f32.xlu0 %v1881
        %v1883 = vpop.xlane.xlu0 %1882
        %v1884 = vadd.f32 %v1768, %v1770
        %1885 = vadd.xlane.f32.xlu0 %v1884
        %v1886 = vpop.xlane.xlu0 %1885
        %v1887 = vadd.f32 %v1772, %v1774
        %1888 = vadd.xlane.f32.xlu0 %v1887
        %v1889 = vpop.xlane.xlu0 %1888
        %v1890 = vadd.f32 %v1776, %v1778
        %1891 = vadd.xlane.f32.xlu0 %v1890
        %v1892 = vpop.xlane.xlu0 %1891
        %v1893 = vadd.f32 %v1780, %v1782
        %1894 = vadd.xlane.f32.xlu0 %v1893
        %v1895 = vpop.xlane.xlu0 %1894
        %v1896 = vadd.f32 %v1784, %v1786
        %1897 = vadd.xlane.f32.xlu0 %v1896
        %v1898 = vpop.xlane.xlu0 %1897
        %v1899 = vadd.f32 %v1788, %v1790
        %1900 = vadd.xlane.f32.xlu0 %v1899
        %v1901 = vpop.xlane.xlu0 %1900
        %v1902 = vadd.f32 %v1792, %v1794
        %1903 = vadd.xlane.f32.xlu0 %v1902
        %v1904 = vpop.xlane.xlu0 %1903
        %v1905 = vadd.f32 %v1796, %v1798
        %1906 = vadd.xlane.f32.xlu0 %v1905
        %v1907 = vpop.xlane.xlu0 %1906
        %v1908 = vadd.f32 %v1800, %v1802
        %1909 = vadd.xlane.f32.xlu0 %v1908
        %v1910 = vpop.xlane.xlu0 %1909
        %v1911 = vadd.f32 %v1804, %v1806
        %1912 = vadd.xlane.f32.xlu0 %v1911
        %v1913 = vpop.xlane.xlu0 %1912
        %v1914 = vadd.f32 %v1808, %v1810
        %1915 = vadd.xlane.f32.xlu0 %v1914
        %v1916 = vpop.xlane.xlu0 %1915
        %v1917 = vadd.f32 %v1812, %v1814
        %1918 = vadd.xlane.f32.xlu0 %v1917
        %v1919 = vpop.xlane.xlu0 %1918
        %v1920 = vadd.f32 %v1816, %v1818
        %1921 = vadd.xlane.f32.xlu0 %v1920
        %v1922 = vpop.xlane.xlu0 %1921
        %v1923 = vadd.f32 %v1820, %v1822
        %1924 = vadd.xlane.f32.xlu0 %v1923
        %v1925 = vpop.xlane.xlu0 %1924
        %v1926 = vadd.f32 %v1824, %v1826
        %1927 = vadd.xlane.f32.xlu0 %v1926
        %v1928 = vpop.xlane.xlu0 %1927
        %v1929 = vadd.f32 %v1828, %v1830
        %1930 = vadd.xlane.f32.xlu0 %v1929
        %v1931 = vpop.xlane.xlu0 %1930
        %v1932 = vadd.f32 %v1832, %v1834
        %1933 = vadd.xlane.f32.xlu0 %v1932
        %v1934 = vpop.xlane.xlu0 %1933
        %v1935 = vadd.f32 %v1836, %v1838
        %1936 = vadd.xlane.f32.xlu0 %v1935
        %v1937 = vpop.xlane.xlu0 %1936
        %v1938 = vadd.f32 %v1840, %v1842
        %1939 = vadd.xlane.f32.xlu0 %v1938
        %v1940 = vpop.xlane.xlu0 %1939
        %v1941 = vadd.f32 %v1844, %v1846
        %1942 = vadd.xlane.f32.xlu0 %v1941
        %v1943 = vpop.xlane.xlu0 %1942
        %v1944 = vadd.f32 %v1848, %v1850
        %1945 = vadd.xlane.f32.xlu0 %v1944
        %v1946 = vpop.xlane.xlu0 %1945
        %v1947 = vpack.c.bf16 %v1728, %v1724
        %v1948 = vpack.c.bf16 %v1730, %v1726
        %v1949 = vpack.c.bf16 %v1736, %v1732
        %v1950 = vpack.c.bf16 %v1738, %v1734
        %v1951 = vpack.c.bf16 %v1744, %v1740
        %v1952 = vpack.c.bf16 %v1746, %v1742
        %v1953 = vpack.c.bf16 %v1752, %v1748
        %v1954 = vpack.c.bf16 %v1754, %v1750
        %v1955 = vpack.c.bf16 %v1760, %v1756
        %v1956 = vpack.c.bf16 %v1762, %v1758
        %v1957 = vpack.c.bf16 %v1768, %v1764
        %v1958 = vpack.c.bf16 %v1770, %v1766
        %v1959 = vpack.c.bf16 %v1776, %v1772
        %v1960 = vpack.c.bf16 %v1778, %v1774
        %v1961 = vpack.c.bf16 %v1784, %v1780
        %v1962 = vpack.c.bf16 %v1786, %v1782
        %v1963 = vpack.c.bf16 %v1792, %v1788
        %v1964 = vpack.c.bf16 %v1794, %v1790
        %v1965 = vpack.c.bf16 %v1800, %v1796
        %v1966 = vpack.c.bf16 %v1802, %v1798
        %v1967 = vpack.c.bf16 %v1808, %v1804
        %v1968 = vpack.c.bf16 %v1810, %v1806
        %v1969 = vpack.c.bf16 %v1816, %v1812
        %v1970 = vpack.c.bf16 %v1818, %v1814
        %v1971 = vpack.c.bf16 %v1824, %v1820
        %v1972 = vpack.c.bf16 %v1826, %v1822
        %v1973 = vpack.c.bf16 %v1832, %v1828
        %v1974 = vpack.c.bf16 %v1834, %v1830
        %v1975 = vpack.c.bf16 %v1840, %v1836
        %v1976 = vpack.c.bf16 %v1842, %v1838
        %v1977 = vpack.c.bf16 %v1848, %v1844
        %v1978 = vpack.c.bf16 %v1850, %v1846
        %1979 = vmatprep.subr.bf16.mxu0 0
        %1980 = vmatpush1.bf16.msra.mxu0 %v1197
        %1981 = vmatprep.subr.bf16.mxu0 0
        %1982 = vmatpush1.bf16.msra.mxu0 %v1196
        %1983 = vmatprep.subr.bf16.mxu0 0
        %1984 = vmatpush1.bf16.msra.mxu0 %v1195
        %1985 = vmatprep.subr.bf16.mxu0 0
        %1986 = vmatpush1.bf16.msra.mxu0 %v1194
        %1987 = vmatprep.subr.bf16.mxu0 0
        %1988 = vmatpush1.bf16.msra.mxu0 %v1193
        %1989 = vmatprep.subr.bf16.mxu0 0
        %1990 = vmatpush1.bf16.msra.mxu0 %v1192
        %1991 = vmatprep.subr.bf16.mxu0 0
        %1992 = vmatpush1.bf16.msra.mxu0 %v1191
        %1993 = vmatprep.subr.bf16.mxu0 0
        %1994 = vmatpush1.bf16.msra.mxu0 %v1190
        %1995 = vmatprep.subr.bf16.mxu0 0
        %1996 = vmatpush2.bf16.msra.mxu0 %v1205
        %1997 = vmatprep.subr.bf16.mxu0 0
        %1998 = vmatpush2.bf16.msra.mxu0 %v1204
        %1999 = vmatprep.subr.bf16.mxu0 0
        %2000 = vmatpush2.bf16.msra.mxu0 %v1203
        %2001 = vmatprep.subr.bf16.mxu0 0
        %2002 = vmatpush2.bf16.msra.mxu0 %v1202
        %2003 = vmatprep.subr.bf16.mxu0 0
        %2004 = vmatpush2.bf16.msra.mxu0 %v1201
        %2005 = vmatprep.subr.bf16.mxu0 0
        %2006 = vmatpush2.bf16.msra.mxu0 %v1200
        %2007 = vmatprep.subr.bf16.mxu0 0
        %2008 = vmatpush2.bf16.msra.mxu0 %v1199
        %2009 = vmatprep.subr.bf16.mxu0 0
        %2010 = vmatpush2.bf16.msra.mxu0 %v1198
        %2011 = vmatprep.mubr.bf16.mxu0 %v1948
        %2012 = vmatmul.mubr.bf16.gmra.mxu0 %v1947
        %v2013 = vpop.f32.mrf.mxu0
        %v2014 = vadd.f32 0.0, %v2013
        %v2015 = vpop.f32.mrf.mxu0
        %v2016 = vpop.f32.mrf.mxu0
        %v2017 = vadd.f32 0.0, %v2016
        %v2018 = vpop.f32.mrf.mxu0
        %2019 = vmatprep.mubr.bf16.mxu0 %v1950
        %2020 = vmatmul.mubr.bf16.gmra.mxu0 %v1949
        %v2021 = vpop.f32.mrf.mxu0
        %v2022 = vadd.f32 0.0, %v2021
        %v2023 = vpop.f32.mrf.mxu0
        %v2024 = vpop.f32.mrf.mxu0
        %v2025 = vadd.f32 0.0, %v2024
        %v2026 = vpop.f32.mrf.mxu0
        %2027 = vmatprep.mubr.bf16.mxu0 %v1952
        %2028 = vmatmul.mubr.bf16.gmra.mxu0 %v1951
        %v2029 = vpop.f32.mrf.mxu0
        %v2030 = vadd.f32 0.0, %v2029
        %v2031 = vpop.f32.mrf.mxu0
        %v2032 = vpop.f32.mrf.mxu0
        %v2033 = vadd.f32 0.0, %v2032
        %v2034 = vpop.f32.mrf.mxu0
        %2035 = vmatprep.mubr.bf16.mxu0 %v1954
        %2036 = vmatmul.mubr.bf16.gmra.mxu0 %v1953
        %v2037 = vpop.f32.mrf.mxu0
        %v2038 = vadd.f32 0.0, %v2037
        %v2039 = vpop.f32.mrf.mxu0
        %v2040 = vpop.f32.mrf.mxu0
        %v2041 = vadd.f32 0.0, %v2040
        %v2042 = vpop.f32.mrf.mxu0
        %2043 = vmatprep.mubr.bf16.mxu0 %v1956
        %2044 = vmatmul.mubr.bf16.gmra.mxu0 %v1955
        %v2045 = vpop.f32.mrf.mxu0
        %v2046 = vadd.f32 0.0, %v2045
        %v2047 = vpop.f32.mrf.mxu0
        %v2048 = vpop.f32.mrf.mxu0
        %v2049 = vadd.f32 0.0, %v2048
        %v2050 = vpop.f32.mrf.mxu0
        %2051 = vmatprep.mubr.bf16.mxu0 %v1958
        %2052 = vmatmul.mubr.bf16.gmra.mxu0 %v1957
        %v2053 = vpop.f32.mrf.mxu0
        %v2054 = vadd.f32 0.0, %v2053
        %v2055 = vpop.f32.mrf.mxu0
        %v2056 = vpop.f32.mrf.mxu0
        %v2057 = vadd.f32 0.0, %v2056
        %v2058 = vpop.f32.mrf.mxu0
        %2059 = vmatprep.mubr.bf16.mxu0 %v1960
        %2060 = vmatmul.mubr.bf16.gmra.mxu0 %v1959
        %v2061 = vpop.f32.mrf.mxu0
        %v2062 = vadd.f32 0.0, %v2061
        %v2063 = vpop.f32.mrf.mxu0
        %v2064 = vpop.f32.mrf.mxu0
        %v2065 = vadd.f32 0.0, %v2064
        %v2066 = vpop.f32.mrf.mxu0
        %2067 = vmatprep.mubr.bf16.mxu0 %v1962
        %2068 = vmatmul.mubr.bf16.gmra.mxu0 %v1961
        %v2069 = vpop.f32.mrf.mxu0
        %v2070 = vadd.f32 0.0, %v2069
        %v2071 = vpop.f32.mrf.mxu0
        %v2072 = vpop.f32.mrf.mxu0
        %v2073 = vadd.f32 0.0, %v2072
        %v2074 = vpop.f32.mrf.mxu0
        %2075 = vmatprep.mubr.bf16.mxu0 %v1964
        %2076 = vmatmul.mubr.bf16.gmra.mxu0 %v1963
        %v2077 = vpop.f32.mrf.mxu0
        %v2078 = vadd.f32 0.0, %v2077
        %v2079 = vpop.f32.mrf.mxu0
        %v2080 = vpop.f32.mrf.mxu0
        %v2081 = vadd.f32 0.0, %v2080
        %v2082 = vpop.f32.mrf.mxu0
        %2083 = vmatprep.mubr.bf16.mxu0 %v1966
        %2084 = vmatmul.mubr.bf16.gmra.mxu0 %v1965
        %v2085 = vpop.f32.mrf.mxu0
        %v2086 = vadd.f32 0.0, %v2085
        %v2087 = vpop.f32.mrf.mxu0
        %v2088 = vpop.f32.mrf.mxu0
        %v2089 = vadd.f32 0.0, %v2088
        %v2090 = vpop.f32.mrf.mxu0
        %2091 = vmatprep.mubr.bf16.mxu0 %v1968
        %2092 = vmatmul.mubr.bf16.gmra.mxu0 %v1967
        %v2093 = vpop.f32.mrf.mxu0
        %v2094 = vadd.f32 0.0, %v2093
        %v2095 = vpop.f32.mrf.mxu0
        %v2096 = vpop.f32.mrf.mxu0
        %v2097 = vadd.f32 0.0, %v2096
        %v2098 = vpop.f32.mrf.mxu0
        %2099 = vmatprep.mubr.bf16.mxu0 %v1970
        %2100 = vmatmul.mubr.bf16.gmra.mxu0 %v1969
        %v2101 = vpop.f32.mrf.mxu0
        %v2102 = vadd.f32 0.0, %v2101
        %v2103 = vpop.f32.mrf.mxu0
        %v2104 = vpop.f32.mrf.mxu0
        %v2105 = vadd.f32 0.0, %v2104
        %v2106 = vpop.f32.mrf.mxu0
        %2107 = vmatprep.mubr.bf16.mxu0 %v1972
        %2108 = vmatmul.mubr.bf16.gmra.mxu0 %v1971
        %v2109 = vpop.f32.mrf.mxu0
        %v2110 = vadd.f32 0.0, %v2109
        %v2111 = vpop.f32.mrf.mxu0
        %v2112 = vpop.f32.mrf.mxu0
        %v2113 = vadd.f32 0.0, %v2112
        %v2114 = vpop.f32.mrf.mxu0
        %2115 = vmatprep.mubr.bf16.mxu0 %v1974
        %2116 = vmatmul.mubr.bf16.gmra.mxu0 %v1973
        %v2117 = vpop.f32.mrf.mxu0
        %v2118 = vadd.f32 0.0, %v2117
        %v2119 = vpop.f32.mrf.mxu0
        %v2120 = vpop.f32.mrf.mxu0
        %v2121 = vadd.f32 0.0, %v2120
        %v2122 = vpop.f32.mrf.mxu0
        %2123 = vmatprep.mubr.bf16.mxu0 %v1976
        %2124 = vmatmul.mubr.bf16.gmra.mxu0 %v1975
        %v2125 = vpop.f32.mrf.mxu0
        %v2126 = vadd.f32 0.0, %v2125
        %v2127 = vpop.f32.mrf.mxu0
        %v2128 = vpop.f32.mrf.mxu0
        %v2129 = vadd.f32 0.0, %v2128
        %v2130 = vpop.f32.mrf.mxu0
        %2131 = vmatprep.mubr.bf16.mxu0 %v1978
        %2132 = vmatmul.mubr.bf16.gmra.mxu0 %v1977
        %v2133 = vpop.f32.mrf.mxu0
        %v2134 = vadd.f32 0.0, %v2133
        %v2135 = vpop.f32.mrf.mxu0
        %v2136 = vpop.f32.mrf.mxu0
        %v2137 = vadd.f32 0.0, %v2136
        %v2138 = vpop.f32.mrf.mxu0
        %2139 = vdwg.mxu0
        %v2140 = vrcp.pop %v1853
        %v2141 = vrcp.pop %v1856
        %v2142 = vrcp.pop %v1859
        %v2143 = vrcp.pop %v1862
        %v2144 = vrcp.pop %v1865
        %v2145 = vrcp.pop %v1868
        %v2146 = vrcp.pop %v1871
        %v2147 = vrcp.pop %v1874
        %v2148 = vrcp.pop %v1877
        %v2149 = vrcp.pop %v1880
        %v2150 = vrcp.pop %v1883
        %v2151 = vrcp.pop %v1886
        %v2152 = vrcp.pop %v1889
        %v2153 = vrcp.pop %v1892
        %v2154 = vrcp.pop %v1895
        %v2155 = vrcp.pop %v1898
        %v2156 = vrcp.pop %v1901
        %v2157 = vrcp.pop %v1904
        %v2158 = vrcp.pop %v1907
        %v2159 = vrcp.pop %v1910
        %v2160 = vrcp.pop %v1913
        %v2161 = vrcp.pop %v1916
        %v2162 = vrcp.pop %v1919
        %v2163 = vrcp.pop %v1922
        %v2164 = vrcp.pop %v1925
        %v2165 = vrcp.pop %v1928
        %v2166 = vrcp.pop %v1931
        %v2167 = vrcp.pop %v1934
        %v2168 = vrcp.pop %v1937
        %v2169 = vrcp.pop %v1940
        %v2170 = vrcp.pop %v1943
        %v2171 = vrcp.pop %v1946
        %v2172 = vmul.f32 %v2014, %v2140
        %v2173 = vmul.f32 %v2017, %v2141
        %v2174 = vmul.f32 %v2022, %v2142
        %v2175 = vmul.f32 %v2025, %v2143
        %v2176 = vmul.f32 %v2030, %v2144
        %v2177 = vmul.f32 %v2033, %v2145
        %v2178 = vmul.f32 %v2038, %v2146
        %v2179 = vmul.f32 %v2041, %v2147
        %v2180 = vmul.f32 %v2046, %v2148
        %v2181 = vmul.f32 %v2049, %v2149
        %v2182 = vmul.f32 %v2054, %v2150
        %v2183 = vmul.f32 %v2057, %v2151
        %v2184 = vmul.f32 %v2062, %v2152
        %v2185 = vmul.f32 %v2065, %v2153
        %v2186 = vmul.f32 %v2070, %v2154
        %v2187 = vmul.f32 %v2073, %v2155
        %v2188 = vmul.f32 %v2078, %v2156
        %v2189 = vmul.f32 %v2081, %v2157
        %v2190 = vmul.f32 %v2086, %v2158
        %v2191 = vmul.f32 %v2089, %v2159
        %v2192 = vmul.f32 %v2094, %v2160
        %v2193 = vmul.f32 %v2097, %v2161
        %v2194 = vmul.f32 %v2102, %v2162
        %v2195 = vmul.f32 %v2105, %v2163
        %v2196 = vmul.f32 %v2110, %v2164
        %v2197 = vmul.f32 %v2113, %v2165
        %v2198 = vmul.f32 %v2118, %v2166
        %v2199 = vmul.f32 %v2121, %v2167
        %v2200 = vmul.f32 %v2126, %v2168
        %v2201 = vmul.f32 %v2129, %v2169
        %v2202 = vmul.f32 %v2134, %v2170
        %v2203 = vmul.f32 %v2137, %v2171
        %2236 = vrot.lane.b32.xlu0 %v2172, 64
        %v2237 = vpop.permute.xlu0 %2236
        %2238 = vrot.lane.b32.xlu0 %v2173, 64
        %v2239 = vpop.permute.xlu0 %2238
        %2240 = vrot.lane.b32.xlu0 %v2174, 64
        %v2241 = vpop.permute.xlu0 %2240
        %2242 = vrot.lane.b32.xlu0 %v2175, 64
        %v2243 = vpop.permute.xlu0 %2242
        %2244 = vrot.lane.b32.xlu0 %v2176, 64
        %v2245 = vpop.permute.xlu0 %2244
        %2246 = vrot.lane.b32.xlu0 %v2177, 64
        %v2247 = vpop.permute.xlu0 %2246
        %2248 = vrot.lane.b32.xlu0 %v2178, 64
        %v2249 = vpop.permute.xlu0 %2248
        %2250 = vrot.lane.b32.xlu0 %v2179, 64
        %v2251 = vpop.permute.xlu0 %2250
        %2252 = vrot.lane.b32.xlu0 %v2180, 64
        %v2253 = vpop.permute.xlu0 %2252
        %2254 = vrot.lane.b32.xlu0 %v2181, 64
        %v2255 = vpop.permute.xlu0 %2254
        %2256 = vrot.lane.b32.xlu0 %v2182, 64
        %v2257 = vpop.permute.xlu0 %2256
        %2258 = vrot.lane.b32.xlu0 %v2183, 64
        %v2259 = vpop.permute.xlu0 %2258
        %2260 = vrot.lane.b32.xlu0 %v2184, 64
        %v2261 = vpop.permute.xlu0 %2260
        %2262 = vrot.lane.b32.xlu0 %v2185, 64
        %v2263 = vpop.permute.xlu0 %2262
        %2264 = vrot.lane.b32.xlu0 %v2186, 64
        %v2265 = vpop.permute.xlu0 %2264
        %2266 = vrot.lane.b32.xlu0 %v2187, 64
        %v2267 = vpop.permute.xlu0 %2266
        %2268 = vrot.lane.b32.xlu0 %v2188, 64
        %v2269 = vpop.permute.xlu0 %2268
        %2270 = vrot.lane.b32.xlu0 %v2189, 64
        %v2271 = vpop.permute.xlu0 %2270
        %2272 = vrot.lane.b32.xlu0 %v2190, 64
        %v2273 = vpop.permute.xlu0 %2272
        %2274 = vrot.lane.b32.xlu0 %v2191, 64
        %v2275 = vpop.permute.xlu0 %2274
        %2276 = vrot.lane.b32.xlu0 %v2192, 64
        %v2277 = vpop.permute.xlu0 %2276
        %2278 = vrot.lane.b32.xlu0 %v2193, 64
        %v2279 = vpop.permute.xlu0 %2278
        %2280 = vrot.lane.b32.xlu0 %v2194, 64
        %v2281 = vpop.permute.xlu0 %2280
        %2282 = vrot.lane.b32.xlu0 %v2195, 64
        %v2283 = vpop.permute.xlu0 %2282
        %2284 = vrot.lane.b32.xlu0 %v2196, 64
        %v2285 = vpop.permute.xlu0 %2284
        %2286 = vrot.lane.b32.xlu0 %v2197, 64
        %v2287 = vpop.permute.xlu0 %2286
        %2288 = vrot.lane.b32.xlu0 %v2198, 64
        %v2289 = vpop.permute.xlu0 %2288
        %2290 = vrot.lane.b32.xlu0 %v2199, 64
        %v2291 = vpop.permute.xlu0 %2290
        %2292 = vrot.lane.b32.xlu0 %v2200, 64
        %v2293 = vpop.permute.xlu0 %2292
        %2294 = vrot.lane.b32.xlu0 %v2201, 64
        %v2295 = vpop.permute.xlu0 %2294
        %2296 = vrot.lane.b32.xlu0 %v2202, 64
        %v2297 = vpop.permute.xlu0 %2296
        %2298 = vrot.lane.b32.xlu0 %v2203, 64
        %v2299 = vpop.permute.xlu0 %2298
        %vm2332 = vcmask 523264
        %2333 = vst.msk [vmem:[%s178] sm:$0xff] %vm2332, %v2237
        %2334 = vst.msk [vmem:[%s178 + $0x8] sm:$0xff] %vm2332, %v2239
        %2335 = vst.msk [vmem:[%s178 + $0x10] sm:$0xff] %vm2332, %v2241
        %2336 = vst.msk [vmem:[%s178 + $0x18] sm:$0xff] %vm2332, %v2243
        %2337 = vst.msk [vmem:[%s178 + $0x20] sm:$0xff] %vm2332, %v2245
        %2338 = vst.msk [vmem:[%s178 + $0x28] sm:$0xff] %vm2332, %v2247
        %2339 = vst.msk [vmem:[%s178 + $0x30] sm:$0xff] %vm2332, %v2249
        %2340 = vst.msk [vmem:[%s178 + $0x38] sm:$0xff] %vm2332, %v2251
        %2341 = vst.msk [vmem:[%s178 + $0x40] sm:$0xff] %vm2332, %v2253
        %2342 = vst.msk [vmem:[%s178 + $0x48] sm:$0xff] %vm2332, %v2255
        %2343 = vst.msk [vmem:[%s178 + $0x50] sm:$0xff] %vm2332, %v2257
        %2344 = vst.msk [vmem:[%s178 + $0x58] sm:$0xff] %vm2332, %v2259
        %2345 = vst.msk [vmem:[%s178 + $0x60] sm:$0xff] %vm2332, %v2261
        %2346 = vst.msk [vmem:[%s178 + $0x68] sm:$0xff] %vm2332, %v2263
        %2347 = vst.msk [vmem:[%s178 + $0x70] sm:$0xff] %vm2332, %v2265
        %2348 = vst.msk [vmem:[%s178 + $0x78] sm:$0xff] %vm2332, %v2267
        %2349 = vst.msk [vmem:[%s178 + $0x80] sm:$0xff] %vm2332, %v2269
        %2350 = vst.msk [vmem:[%s178 + $0x88] sm:$0xff] %vm2332, %v2271
        %2351 = vst.msk [vmem:[%s178 + $0x90] sm:$0xff] %vm2332, %v2273
        %2352 = vst.msk [vmem:[%s178 + $0x98] sm:$0xff] %vm2332, %v2275
        %2353 = vst.msk [vmem:[%s178 + $0xa0] sm:$0xff] %vm2332, %v2277
        %2354 = vst.msk [vmem:[%s178 + $0xa8] sm:$0xff] %vm2332, %v2279
        %2355 = vst.msk [vmem:[%s178 + $0xb0] sm:$0xff] %vm2332, %v2281
        %2356 = vst.msk [vmem:[%s178 + $0xb8] sm:$0xff] %vm2332, %v2283
        %2357 = vst.msk [vmem:[%s178 + $0xc0] sm:$0xff] %vm2332, %v2285
        %2358 = vst.msk [vmem:[%s178 + $0xc8] sm:$0xff] %vm2332, %v2287
        %2359 = vst.msk [vmem:[%s178 + $0xd0] sm:$0xff] %vm2332, %v2289
        %2360 = vst.msk [vmem:[%s178 + $0xd8] sm:$0xff] %vm2332, %v2291
        %2361 = vst.msk [vmem:[%s178 + $0xe0] sm:$0xff] %vm2332, %v2293
        %2362 = vst.msk [vmem:[%s178 + $0xe8] sm:$0xff] %vm2332, %v2295
        %2363 = vst.msk [vmem:[%s178 + $0xf0] sm:$0xff] %vm2332, %v2297
        %2364 = vst.msk [vmem:[%s178 + $0xf8] sm:$0xff] %vm2332, %v2299
        %p2365 = scmp.lt.s32.totalorder %s17, 1
        %s2366 = scalar_select %p2365, %s17, 1
        %s2367 = smul.addr %s2366, 32
        %s2368 = smul.addr %s2367, 8
        %s2369 = scalar_lea.vmem %s2, %s2368
        // Predicated region
        $region37: #{tpu_custom_call.1} parent=27 // pred_check
          %p2370 = pneg %p82
        $region38: #{tpu_custom_call.1} parent=27 // pred_check_branch
          %2372 = sbr.rel (%p2370) target = $region40
        $region39: #{tpu_custom_call.1} parent=27 // pred_region
          _
        $region40: #{tpu_custom_call.1} parent=27 // pred_fallthru
          _
      $region28: #{tpu_custom_call.1} parent=5 // pred_fallthru
        _
      %p2373 = scmp.le.s32.totalorder 2, %s12
      // Predicated region
      $region41: #{tpu_custom_call.1} parent=5 // pred_check
        %p2374 = pneg %p2373
      $region42: #{tpu_custom_call.1} parent=5 // pred_check_branch
        %2376 = sbr.rel (%p2374) target = $region44
      $region43: #{tpu_custom_call.1} parent=5 // pred_region
        %s2377 = ssub.s32 %s12, 2
        // Predicated region
        $region45: #{tpu_custom_call.1} parent=43 // pred_check
          %p2378 = pneg %p88
        $region46: #{tpu_custom_call.1} parent=43 // pred_check_branch
          %2380 = sbr.rel (%p2378) target = $region48
        $region47: #{tpu_custom_call.1} parent=43 // pred_region
          %p2381 = scmp.lt.s32.totalorder %s18, 1
          %s2382 = scalar_select %p2381, %s18, 1
          %s2383 = smul.addr %s2382, 32
          %s2384 = smul.addr %s2383, 8
          %s2385 = scalar_lea.vmem %s2, %s2384
        $region48: #{tpu_custom_call.1} parent=43 // pred_fallthru
          _
      $region44: #{tpu_custom_call.1} parent=5 // pred_fallthru
        _
    $region6: #{tpu_custom_call.1} parent=1 // loop_footer
      %s16 = sadd.s32 1, %s12
    $region7: #{tpu_custom_call.1} parent=1 // loop_footer_branch
      %11 = sbr.rel target = $region3
    $region8: #{tpu_custom_call.1} parent=1 // loop_exit
      _
    %2386 = vsyncpa [#allocation3], 1
    %s2387 = scalar_lea.sflag [#allocation3], 1
    %2388 = vsyncpa %s2387, 1
    %2389 = vsyncpa [#allocation5], 1

</llo_original>
